<compile_context>
chip_gen: v6e
topology: v6e:2x2x1
jax: 0.10.0
libtpu: 0.0.40
codegen_flags: <defaults>
</compile_context>

<pallas_src>
import functools

import jax
import jax.numpy as jnp
from jax.experimental import pallas as pl
from jax.experimental.pallas import tpu as pltpu

IN_FEATURES = 16 * 12 * 12   # 2304 = 18 * 128 (already lane-aligned)
HIDDEN = 100
OUT_FEATURES = 2

HIDDEN_PAD = 128             # 100 -> 128 (lane multiple)
OUT_PAD = 128                # 2   -> 128 (lane-dense output block)


def _round_up(n: int, m: int) -> int:
    return ((n + m - 1) // m) * m


def _default_block_b() -> int:
    """Per-generation batch tile, sized to the default scoped-VMEM budget."""
    try:
        kind = jax.devices()[0].device_kind.lower()
    except Exception:
        return 512
    if "v6" in kind or "v7" in kind:
        # v6e/v7x: 32 MiB default scoped VMEM. tb=1024 -> 2x9 MiB x bufs +
        # ~1.2 MiB single-buffered weights + ~1 MiB out ~= 21 MiB.
        return 1024
    # v5e (and older): 16 MiB default scoped VMEM. tb=512 -> ~11 MiB.
    return 512


def _examplenet_kernel(x_ref, w1_ref, b1_ref, w2_ref, b2_ref, o_ref):
    # fc1: [tb, 2304] @ [2304, 128] + [1, 128], ReLU (VPU, hidden under MXU/DMA)
    h = jnp.dot(x_ref[...], w1_ref[...], preferred_element_type=jnp.float32)
    h = jnp.maximum(h + b1_ref[...].astype(jnp.float32), 0.0)
    # fc2: [tb, 128] @ [128, 128] + [1, 128]  (lane-dense output)
    out = jnp.dot(h.astype(w2_ref.dtype), w2_ref[...],
                  preferred_element_type=jnp.float32)
    o_ref[...] = (out + b2_ref[...].astype(jnp.float32)).astype(o_ref.dtype)


@functools.partial(jax.jit, static_argnames=("block_b", "single_buffer_weights"))
def _forward_impl(x, w1_p, b1_p, w2_p, b2_p, *, block_b, single_buffer_weights):
    B = x.shape[0]
    # Match the (pre-padded, possibly bf16) parameter dtype. For the bf16 path,
    # callers should ideally hand x over in bf16 already so this is a no-op.
    x = x.astype(w1_p.dtype)

    # Batch tile: multiple of 8 (sublane), capped per generation, and halved for
    # small/medium B so the parallel grid has >= 2 steps (feeds both v7x TCs).
    tb = min(block_b, max(8, _round_up(pl.cdiv(B, 2), 8)))
    grid = (pl.cdiv(B, tb),)

    # Constant-index weights never change across the grid -> single buffer.
    wmode = dict(pipeline_mode=pl.Buffered(1)) if single_buffer_weights else {}

    x_item = x.dtype.itemsize
    w_item = w1_p.dtype.itemsize
    flops = 2 * B * IN_FEATURES * HIDDEN_PAD + 2 * B * HIDDEN_PAD * OUT_PAD
    bytes_accessed = (
        B * IN_FEATURES * x_item                                   # x stream (dominant)
        + (IN_FEATURES * HIDDEN_PAD + HIDDEN_PAD * OUT_PAD
           + HIDDEN_PAD + OUT_PAD) * w_item                        # resident params
        + B * OUT_PAD * 4                                          # padded output
    )

    out_padded = pl.pallas_call(
        _examplenet_kernel,
        out_shape=jax.ShapeDtypeStruct((B, OUT_PAD), jnp.float32),
        grid=grid,
        in_specs=[
            pl.BlockSpec((tb, IN_FEATURES), lambda i: (i, 0)),                   # x (streamed)
            pl.BlockSpec((IN_FEATURES, HIDDEN_PAD), lambda i: (0, 0), **wmode),  # w1 (resident)
            pl.BlockSpec((1, HIDDEN_PAD), lambda i: (0, 0), **wmode),            # b1 (resident)
            pl.BlockSpec((HIDDEN_PAD, OUT_PAD), lambda i: (0, 0), **wmode),      # w2 (resident)
            pl.BlockSpec((1, OUT_PAD), lambda i: (0, 0), **wmode),               # b2 (resident)
        ],
        out_specs=pl.BlockSpec((tb, OUT_PAD), lambda i: (i, 0)),
        compiler_params=pltpu.CompilerParams(
            dimension_semantics=("parallel",),
        ),
        cost_estimate=pl.CostEstimate(
            flops=flops, bytes_accessed=bytes_accessed, transcendentals=0
        ),
    )(x, w1_p, b1_p, w2_p, b2_p)

    # Strip the output-lane padding (rows are already exactly B; no batch pad).
    return out_padded[:, :OUT_FEATURES]


_SINGLE_BUFFER_OK = True


def examplenet_forward(x, w1_p, b1_p, w2_p, b2_p, *, block_b=None):
    """x: [B, 2304]; padded params from pad_params(). Returns [B, 2] float32."""
    global _SINGLE_BUFFER_OK
    if block_b is None:
        block_b = _default_block_b()
    if _SINGLE_BUFFER_OK:
        try:
            return _forward_impl(x, w1_p, b1_p, w2_p, b2_p,
                                 block_b=block_b, single_buffer_weights=True)
        except Exception:
            # Installed jax rejected pipeline_mode=pl.Buffered(1); fall back to
            # the default double-buffered weights (still correct, ~1.2 MiB more VMEM).
            _SINGLE_BUFFER_OK = False
    return _forward_impl(x, w1_p, b1_p, w2_p, b2_p,
                         block_b=block_b, single_buffer_weights=False)


def pad_params(w1, b1, w2, b2, dtype=jnp.float32):
    """Zero-pad HIDDEN 100->128 and OUT 2->128, cast once. Call ONCE at init."""
    w1_p = jnp.pad(w1, ((0, 0), (0, HIDDEN_PAD - HIDDEN))).astype(dtype)
    b1_p = jnp.pad(b1.reshape(1, HIDDEN),
                   ((0, 0), (0, HIDDEN_PAD - HIDDEN))).astype(dtype)
    w2_p = jnp.pad(w2, ((0, HIDDEN_PAD - HIDDEN),
                        (0, OUT_PAD - OUT_FEATURES))).astype(dtype)
    b2_p = jnp.pad(b2.reshape(1, OUT_FEATURES),
                   ((0, 0), (0, OUT_PAD - OUT_FEATURES))).astype(dtype)
    return w1_p, b1_p, w2_p, b2_p


def init_params(key):
    """Deterministic synthetic parameters matching nn.Linear shapes.

    PyTorch: fc1.weight [100, 2304], fc1.bias [100]; fc2.weight [2, 100], fc2.bias [2].
    Stored here transposed (in, out) for the kernel.
    """
    k1, k2, k3, k4 = jax.random.split(key, 4)
    bound1 = 1.0 / (IN_FEATURES ** 0.5)
    bound2 = 1.0 / (HIDDEN ** 0.5)
    w1 = jax.random.uniform(k1, (IN_FEATURES, HIDDEN), jnp.float32, -bound1, bound1)
    b1 = jax.random.uniform(k2, (HIDDEN,), jnp.float32, -bound1, bound1)
    w2 = jax.random.uniform(k3, (HIDDEN, OUT_FEATURES), jnp.float32, -bound2, bound2)
    b2 = jax.random.uniform(k4, (OUT_FEATURES,), jnp.float32, -bound2, bound2)
    return w1, b1, w2, b2


def reference_forward(x, w1, b1, w2, b2):
    h = jnp.maximum(x @ w1 + b1[None, :], 0.0)
    return h @ w2 + b2[None, :]


if __name__ == "__main__":
    key = jax.random.PRNGKey(0)
    kx, kp = jax.random.split(key)

    batch = 2
    x = jax.random.normal(kx, (batch, IN_FEATURES), jnp.float32)
    w1, b1, w2, b2 = init_params(kp)

    # Padding / casting of parameters is done ONCE here (hoisted out of forward).
    params = pad_params(w1, b1, w2, b2)

    out = jax.block_until_ready(examplenet_forward(x, *params))
    ref = reference_forward(x, w1, b1, w2, b2)
    assert out.shape == (batch, OUT_FEATURES)
    assert jnp.allclose(out, ref, atol=1e-4, rtol=1e-4)

    # Batch that is not a tile multiple: exercises Pallas' ragged last block
    # (no jnp.pad copy of x anymore).
    x_big = jax.random.normal(kx, (37, IN_FEATURES), jnp.float32)
    out_big = jax.block_until_ready(examplenet_forward(x_big, *params))
    assert out_big.shape == (37, OUT_FEATURES)
    assert jnp.allclose(out_big, reference_forward(x_big, w1, b1, w2, b2),
                        atol=1e-4, rtol=1e-4)

    # Optional bf16 path (halves the dominant x HBM stream; f32 accumulation).
    params_bf16 = pad_params(w1, b1, w2, b2, dtype=jnp.bfloat16)
    out_bf16 = jax.block_until_ready(examplenet_forward(x_big, *params_bf16))
    assert out_bf16.shape == (37, OUT_FEATURES)
    assert jnp.allclose(out_bf16, reference_forward(x_big, w1, b1, w2, b2),
                        atol=1e-1, rtol=1e-1)

    print("KERNEL_OK")
</pallas_src>

<mosaic_0001>
module attributes {stable_mosaic.version = 11 : i64} {
  func.func @_examplenet_kernel(%arg0: i32, %arg1: memref<8x2304xf32, #tpu.memory_space<vmem>>, %arg2: memref<2304x128xf32, #tpu.memory_space<vmem>>, %arg3: memref<1x128xf32, #tpu.memory_space<vmem>>, %arg4: memref<128x128xf32, #tpu.memory_space<vmem>>, %arg5: memref<1x128xf32, #tpu.memory_space<vmem>>, %arg6: memref<8x128xf32, #tpu.memory_space<vmem>>) attributes {dimension_semantics = [#tpu.dimension_semantics<parallel>], iteration_bounds = array<i64: 1>, scalar_prefetch = 0 : i64, scratch_operands = 0 : i64, tpu.core_type = #tpu.core_type<tc>, window_params = [{transform_indices = @transform_0, window_bounds = array<i64: 8, 2304>}, {pipeline_mode = #tpu.pipeline_mode<synchronous>, transform_indices = @transform_1, window_bounds = array<i64: 2304, 128>}, {pipeline_mode = #tpu.pipeline_mode<synchronous>, transform_indices = @transform_2, window_bounds = array<i64: 1, 128>}, {pipeline_mode = #tpu.pipeline_mode<synchronous>, transform_indices = @transform_3, window_bounds = array<i64: 128, 128>}, {pipeline_mode = #tpu.pipeline_mode<synchronous>, transform_indices = @transform_4, window_bounds = array<i64: 1, 128>}, {transform_indices = @transform_5, window_bounds = array<i64: 8, 128>}]} {
    %c0 = arith.constant 0 : index
    %c0_0 = arith.constant 0 : index
    %0 = vector.load %arg1[%c0, %c0_0] : memref<8x2304xf32, #tpu.memory_space<vmem>>, vector<8x2304xf32>
    %c0_1 = arith.constant 0 : index
    %c0_2 = arith.constant 0 : index
    %1 = vector.load %arg2[%c0_1, %c0_2] : memref<2304x128xf32, #tpu.memory_space<vmem>>, vector<2304x128xf32>
    %cst = arith.constant dense<0.000000e+00> : vector<8x128xf32>
    %2 = tpu.matmul %0, %1, %cst {dimension_numbers = #tpu.dot_dimension_numbers<[1], [0], [0], [1], [0, 0, 1, 1], [], []>} : vector<8x2304xf32>, vector<2304x128xf32>, vector<8x128xf32> -> vector<8x128xf32>
    %c0_3 = arith.constant 0 : index
    %c0_4 = arith.constant 0 : index
    %3 = vector.load %arg3[%c0_3, %c0_4] : memref<1x128xf32, #tpu.memory_space<vmem>>, vector<1x128xf32>
    %4 = vector.broadcast %3 : vector<1x128xf32> to vector<8x128xf32>
    %5 = arith.addf %2, %4 : vector<8x128xf32>
    %cst_5 = arith.constant 0.000000e+00 : f32
    %6 = vector.broadcast %cst_5 : f32 to vector<8x128xf32>
    %7 = arith.maximumf %5, %6 : vector<8x128xf32>
    %c0_6 = arith.constant 0 : index
    %c0_7 = arith.constant 0 : index
    %8 = vector.load %arg4[%c0_6, %c0_7] : memref<128x128xf32, #tpu.memory_space<vmem>>, vector<128x128xf32>
    %cst_8 = arith.constant dense<0.000000e+00> : vector<8x128xf32>
    %9 = tpu.matmul %7, %8, %cst_8 {dimension_numbers = #tpu.dot_dimension_numbers<[1], [0], [0], [1], [0, 0, 1, 1], [], []>} : vector<8x128xf32>, vector<128x128xf32>, vector<8x128xf32> -> vector<8x128xf32>
    %c0_9 = arith.constant 0 : index
    %c0_10 = arith.constant 0 : index
    %10 = vector.load %arg5[%c0_9, %c0_10] : memref<1x128xf32, #tpu.memory_space<vmem>>, vector<1x128xf32>
    %11 = vector.broadcast %10 : vector<1x128xf32> to vector<8x128xf32>
    %12 = arith.addf %9, %11 : vector<8x128xf32>
    %c0_11 = arith.constant 0 : index
    %c0_12 = arith.constant 0 : index
    %13 = vector.load %arg6[%c0_11, %c0_12] : memref<8x128xf32, #tpu.memory_space<vmem>>, vector<8x128xf32>
    tpu.vector_store %arg6[%c0_11, %c0_12], %12 {strides = array<i32>} : memref<8x128xf32, #tpu.memory_space<vmem>>, vector<8x128xf32>,
    return
  }
  func.func @transform_0(%arg0: i32) -> (i32, i32) {
    %c0_i32 = arith.constant 0 : i32
    %c0_i32_0 = arith.constant 0 : i32
    return %arg0, %c0_i32 : i32, i32
  }
  func.func @transform_1(%arg0: i32) -> (i32, i32) {
    %c0_i32 = arith.constant 0 : i32
    %c0_i32_0 = arith.constant 0 : i32
    %c0_i32_1 = arith.constant 0 : i32
    return %c0_i32, %c0_i32_0 : i32, i32
  }
  func.func @transform_2(%arg0: i32) -> (i32, i32) {
    %c0_i32 = arith.constant 0 : i32
    %c0_i32_0 = arith.constant 0 : i32
    %c0_i32_1 = arith.constant 0 : i32
    return %c0_i32, %c0_i32_0 : i32, i32
  }
  func.func @transform_3(%arg0: i32) -> (i32, i32) {
    %c0_i32 = arith.constant 0 : i32
    %c0_i32_0 = arith.constant 0 : i32
    %c0_i32_1 = arith.constant 0 : i32
    return %c0_i32, %c0_i32_0 : i32, i32
  }
  func.func @transform_4(%arg0: i32) -> (i32, i32) {
    %c0_i32 = arith.constant 0 : i32
    %c0_i32_0 = arith.constant 0 : i32
    %c0_i32_1 = arith.constant 0 : i32
    return %c0_i32, %c0_i32_0 : i32, i32
  }
  func.func @transform_5(%arg0: i32) -> (i32, i32) {
    %c0_i32 = arith.constant 0 : i32
    %c0_i32_0 = arith.constant 0 : i32
    return %arg0, %c0_i32 : i32, i32
  }
}

module attributes {stable_mosaic.version = 11 : i64} {
  func.func @_examplenet_kernel(%arg0: i32, %arg1: memref<8x2304xf32, #tpu.memory_space<vmem>>, %arg2: memref<2304x128xf32, #tpu.memory_space<vmem>>, %arg3: memref<1x128xf32, #tpu.memory_space<vmem>>, %arg4: memref<128x128xf32, #tpu.memory_space<vmem>>, %arg5: memref<1x128xf32, #tpu.memory_space<vmem>>, %arg6: memref<8x128xf32, #tpu.memory_space<vmem>>) attributes {dimension_semantics = [#tpu.dimension_semantics<parallel>], iteration_bounds = array<i64: 1>, scalar_prefetch = 0 : i64, scratch_operands = 0 : i64, tpu.core_type = #tpu.core_type<tc>, window_params = [{transform_indices = @transform_0, window_bounds = array<i64: 8, 2304>}, {pipeline_mode = #tpu.pipeline_mode<synchronous>, transform_indices = @transform_1, window_bounds = array<i64: 2304, 128>}, {pipeline_mode = #tpu.pipeline_mode<synchronous>, transform_indices = @transform_2, window_bounds = array<i64: 1, 128>}, {pipeline_mode = #tpu.pipeline_mode<synchronous>, transform_indices = @transform_3, window_bounds = array<i64: 128, 128>}, {pipeline_mode = #tpu.pipeline_mode<synchronous>, transform_indices = @transform_4, window_bounds = array<i64: 1, 128>}, {transform_indices = @transform_5, window_bounds = array<i64: 8, 128>}]} {
    %c0 = arith.constant 0 : index
    %c0_0 = arith.constant 0 : index
    %0 = vector.load %arg1[%c0, %c0_0] : memref<8x2304xf32, #tpu.memory_space<vmem>>, vector<8x2304xf32>
    %c0_1 = arith.constant 0 : index
    %c0_2 = arith.constant 0 : index
    %1 = vector.load %arg2[%c0_1, %c0_2] : memref<2304x128xf32, #tpu.memory_space<vmem>>, vector<2304x128xf32>
    %cst = arith.constant dense<0.000000e+00> : vector<8x128xf32>
    %2 = tpu.matmul %0, %1, %cst {dimension_numbers = #tpu.dot_dimension_numbers<[1], [0], [0], [1], [0, 0, 1, 1], [], []>} : vector<8x2304xf32>, vector<2304x128xf32>, vector<8x128xf32> -> vector<8x128xf32>
    %c0_3 = arith.constant 0 : index
    %c0_4 = arith.constant 0 : index
    %3 = vector.load %arg3[%c0_3, %c0_4] : memref<1x128xf32, #tpu.memory_space<vmem>>, vector<1x128xf32>
    %4 = vector.broadcast %3 : vector<1x128xf32> to vector<8x128xf32>
    %5 = arith.addf %2, %4 : vector<8x128xf32>
    %cst_5 = arith.constant 0.000000e+00 : f32
    %6 = vector.broadcast %cst_5 : f32 to vector<8x128xf32>
    %7 = arith.maximumf %5, %6 : vector<8x128xf32>
    %c0_6 = arith.constant 0 : index
    %c0_7 = arith.constant 0 : index
    %8 = vector.load %arg4[%c0_6, %c0_7] : memref<128x128xf32, #tpu.memory_space<vmem>>, vector<128x128xf32>
    %cst_8 = arith.constant dense<0.000000e+00> : vector<8x128xf32>
    %9 = tpu.matmul %7, %8, %cst_8 {dimension_numbers = #tpu.dot_dimension_numbers<[1], [0], [0], [1], [0, 0, 1, 1], [], []>} : vector<8x128xf32>, vector<128x128xf32>, vector<8x128xf32> -> vector<8x128xf32>
    %c0_9 = arith.constant 0 : index
    %c0_10 = arith.constant 0 : index
    %10 = vector.load %arg5[%c0_9, %c0_10] : memref<1x128xf32, #tpu.memory_space<vmem>>, vector<1x128xf32>
    %11 = vector.broadcast %10 : vector<1x128xf32> to vector<8x128xf32>
    %12 = arith.addf %9, %11 : vector<8x128xf32>
    %c0_11 = arith.constant 0 : index
    %c0_12 = arith.constant 0 : index
    %13 = vector.load %arg6[%c0_11, %c0_12] : memref<8x128xf32, #tpu.memory_space<vmem>>, vector<8x128xf32>
    tpu.vector_store %arg6[%c0_11, %c0_12], %12 {strides = array<i32>} : memref<8x128xf32, #tpu.memory_space<vmem>>, vector<8x128xf32>,
    return
  }
  func.func @transform_0(%arg0: i32) -> (i32, i32) {
    %c0_i32 = arith.constant 0 : i32
    %c0_i32_0 = arith.constant 0 : i32
    return %arg0, %c0_i32 : i32, i32
  }
  func.func @transform_1(%arg0: i32) -> (i32, i32) {
    %c0_i32 = arith.constant 0 : i32
    %c0_i32_0 = arith.constant 0 : i32
    %c0_i32_1 = arith.constant 0 : i32
    return %c0_i32, %c0_i32_0 : i32, i32
  }
  func.func @transform_2(%arg0: i32) -> (i32, i32) {
    %c0_i32 = arith.constant 0 : i32
    %c0_i32_0 = arith.constant 0 : i32
    %c0_i32_1 = arith.constant 0 : i32
    return %c0_i32, %c0_i32_0 : i32, i32
  }
  func.func @transform_3(%arg0: i32) -> (i32, i32) {
    %c0_i32 = arith.constant 0 : i32
    %c0_i32_0 = arith.constant 0 : i32
    %c0_i32_1 = arith.constant 0 : i32
    return %c0_i32, %c0_i32_0 : i32, i32
  }
  func.func @transform_4(%arg0: i32) -> (i32, i32) {
    %c0_i32 = arith.constant 0 : i32
    %c0_i32_0 = arith.constant 0 : i32
    %c0_i32_1 = arith.constant 0 : i32
    return %c0_i32, %c0_i32_0 : i32, i32
  }
  func.func @transform_5(%arg0: i32) -> (i32, i32) {
    %c0_i32 = arith.constant 0 : i32
    %c0_i32_0 = arith.constant 0 : i32
    return %arg0, %c0_i32 : i32, i32
  }
}

</mosaic_0001>

<llo_original>
// kernel: _forward_impl.1
$region0: #{_forward_impl.1}
  #allocation0 [shape = 'u32[]', space=smem, size = 0x4, offset = 0x4, fixed_abs, tag = 'smem constant byte address 0x4 - core index']
  #allocation1 [shape = 'u32[144,128]{1,0:T(1,128)}', space=vmem, size = 0x12000, scoped, tag = 'internal scratch']
  %s0 = inlined_call_operand.hbm [shape: f32[2,2304], index: 0, kind: input, shape index: {}]
  %s1 = inlined_call_operand.hbm [shape: f32[2304,128], index: 1, kind: input, shape index: {}]
  %s2 = inlined_call_operand.hbm [shape: f32[1,128], index: 2, kind: input, shape index: {}]
  %s3 = inlined_call_operand.hbm [shape: f32[128,128], index: 3, kind: input, shape index: {}]
  %s4 = inlined_call_operand.hbm [shape: f32[1,128], index: 4, kind: input, shape index: {}]
  %s5 = inlined_call_operand.hbm [shape: f32[2,128], index: 5, kind: output, shape index: {}]
  %s6 = sld [smem:[#allocation0]]
  $region50: #{_forward_impl.1} parent=0
    _
  %s8 = ssub.s32 1, %s6
  %s9 = scalar_select 0, %s8, %s6
  $region1: #{_forward_impl.1} parent=0
    #allocation2 [shape = 'u8[73728]{0}', space=vmem, size = 0x12000, scoped, tag = 'input window, operand 0, single buffered']
    #allocation3 [shape = 's32[1]{0}', space=sflag, size = 0x4, scoped, tag = 'scoped memory for _forward_impl.1']
    #allocation4 [shape = 's32[1]{0}', space=sflag, size = 0x4, scoped, tag = 'scoped memory for _forward_impl.1']
    #allocation5 [shape = 'u8[1179648]{0}', space=vmem, size = 0x120000, scoped, tag = 'input window, operand 1, single buffered']
    #allocation6 [shape = 's32[1]{0}', space=sflag, size = 0x4, scoped, tag = 'scoped memory for _forward_impl.1']
    #allocation7 [shape = 'u8[512]{0}', space=vmem, size = 0x400, scoped, tag = 'input window, operand 2, single buffered']
    #allocation8 [shape = 'u8[65536]{0}', space=vmem, size = 0x10000, scoped, tag = 'input window, operand 3, single buffered']
    #allocation9 [shape = 's32[1]{0}', space=sflag, size = 0x4, scoped, tag = 'scoped memory for _forward_impl.1']
    #allocation10 [shape = 'u8[512]{0}', space=vmem, size = 0x400, scoped, tag = 'input window, operand 4, single buffered']
    #allocation11 [shape = 'u8[4096]{0}', space=vmem, size = 0x1000, scoped, tag = 'output window, operand 0, single buffered']
    %10 = vsyncpa [#allocation3], 0
    %11 = vsyncpa [#allocation6], 0
    %12 = vsyncpa [#allocation9], 0
    %13 = vsyncpa [#allocation4], 0
    // Predicated region
    $region2: #{_forward_impl.1} parent=1 // pred_check
      _
    $region3: #{_forward_impl.1} parent=1 // pred_check_branch
      %15 = sbr.rel (0) target = $region5
    $region4: #{_forward_impl.1} parent=1 // pred_region
      %s17 = ssub.s32 2304, 576
      %18 = vsyncadd [#allocation3], %s17
      %s19 = sshll.u32 [#allocation2], 4
      %s20 = int_to_ptr.vmem [resolvable:$true] %s19
      %25 = dma.hbm_to_vmem [thread:$0]  %s0, 576, %s20, [#allocation3], 576, 576, 36
    $region5: #{_forward_impl.1} parent=1 // pred_fallthru
      _
    // Predicated region
    $region6: #{_forward_impl.1} parent=1 // pred_check
      _
    $region7: #{_forward_impl.1} parent=1 // pred_check_branch
      %27 = sbr.rel (0) target = $region9
    $region8: #{_forward_impl.1} parent=1 // pred_region
      %s29 = ssub.s32 36864, 36864
      %30 = vsyncadd [#allocation6], %s29
      %s31 = sshll.u32 [#allocation5], 4
      %s32 = int_to_ptr.vmem [resolvable:$true] %s31
      %37 = dma.hbm_to_vmem [thread:$0]  %s1, 36864, %s32, [#allocation6], 128, 128, 8
    $region9: #{_forward_impl.1} parent=1 // pred_fallthru
      _
    // Predicated region
    $region10: #{_forward_impl.1} parent=1 // pred_check
      _
    $region11: #{_forward_impl.1} parent=1 // pred_check_branch
      %39 = sbr.rel (0) target = $region13
    $region12: #{_forward_impl.1} parent=1 // pred_region
      %s41 = ssub.s32 16, 16
      %42 = vsyncadd [#allocation6], %s41
      %s44 = sshll.u32 [#allocation7], 4
      %s45 = int_to_ptr.vmem [resolvable:$true] %s44
      %47 = dma.hbm_to_vmem [thread:$0]  %s2, 16, %s45, [#allocation6]
    $region13: #{_forward_impl.1} parent=1 // pred_fallthru
      _
    // Predicated region
    $region14: #{_forward_impl.1} parent=1 // pred_check
      _
    $region15: #{_forward_impl.1} parent=1 // pred_check_branch
      %49 = sbr.rel (0) target = $region17
    $region16: #{_forward_impl.1} parent=1 // pred_region
      %s51 = ssub.s32 2048, 2048
      %52 = vsyncadd [#allocation9], %s51
      %s53 = sshll.u32 [#allocation8], 4
      %s54 = int_to_ptr.vmem [resolvable:$true] %s53
      %59 = dma.hbm_to_vmem [thread:$0]  %s3, 2048, %s54, [#allocation9], 128, 128, 8
    $region17: #{_forward_impl.1} parent=1 // pred_fallthru
      _
    // Predicated region
    $region18: #{_forward_impl.1} parent=1 // pred_check
      _
    $region19: #{_forward_impl.1} parent=1 // pred_check_branch
      %61 = sbr.rel (0) target = $region21
    $region20: #{_forward_impl.1} parent=1 // pred_region
      %s63 = ssub.s32 16, 16
      %64 = vsyncadd [#allocation9], %s63
      %s66 = sshll.u32 [#allocation10], 4
      %s67 = int_to_ptr.vmem [resolvable:$true] %s66
      %69 = dma.hbm_to_vmem [thread:$0]  %s4, 16, %s67, [#allocation9]
    $region21: #{_forward_impl.1} parent=1 // pred_fallthru
      _
    // Predicated region
    $region22: #{_forward_impl.1} parent=1 // pred_check
      _
    $region23: #{_forward_impl.1} parent=1 // pred_check_branch
      %71 = sbr.rel (0) target = $region25
    $region24: #{_forward_impl.1} parent=1 // pred_region
      %72 = dma.done [#allocation3], 2304
    $region25: #{_forward_impl.1} parent=1 // pred_fallthru
      _
    // Predicated region
    $region26: #{_forward_impl.1} parent=1 // pred_check
      _
    $region27: #{_forward_impl.1} parent=1 // pred_check_branch
      %74 = sbr.rel (0) target = $region29
    $region28: #{_forward_impl.1} parent=1 // pred_region
      %75 = dma.done [#allocation6], 36864
    $region29: #{_forward_impl.1} parent=1 // pred_fallthru
      _
    // Predicated region
    $region30: #{_forward_impl.1} parent=1 // pred_check
      _
    $region31: #{_forward_impl.1} parent=1 // pred_check_branch
      %77 = sbr.rel (0) target = $region33
    $region32: #{_forward_impl.1} parent=1 // pred_region
      %78 = dma.done [#allocation6], 16
    $region33: #{_forward_impl.1} parent=1 // pred_fallthru
      _
    // Predicated region
    $region34: #{_forward_impl.1} parent=1 // pred_check
      _
    $region35: #{_forward_impl.1} parent=1 // pred_check_branch
      %80 = sbr.rel (0) target = $region37
    $region36: #{_forward_impl.1} parent=1 // pred_region
      %81 = dma.done [#allocation9], 2048
    $region37: #{_forward_impl.1} parent=1 // pred_fallthru
      _
    // Predicated region
    $region38: #{_forward_impl.1} parent=1 // pred_check
      _
    $region39: #{_forward_impl.1} parent=1 // pred_check_branch
      %83 = sbr.rel (0) target = $region41
    $region40: #{_forward_impl.1} parent=1 // pred_region
      %84 = dma.done [#allocation9], 16
    $region41: #{_forward_impl.1} parent=1 // pred_fallthru
      _
    %v85 = vld [vmem:[#allocation2] sm:$0xff]
    %v86 = vld [vmem:[#allocation2 + $0x8] sm:$0xff]
    %v87 = vld [vmem:[#allocation2 + $0x10] sm:$0xff]
    %v88 = vld [vmem:[#allocation2 + $0x18] sm:$0xff]
    %v89 = vld [vmem:[#allocation2 + $0x20] sm:$0xf]
    %v90 = vld [vmem:[#allocation2 + $0x24] sm:$0xff]
    %v91 = vld [vmem:[#allocation2 + $0x2c] sm:$0xff]
    %v92 = vld [vmem:[#allocation2 + $0x34] sm:$0xff]
    %v93 = vld [vmem:[#allocation2 + $0x3c] sm:$0xff]
    %v94 = vld [vmem:[#allocation2 + $0x44] sm:$0xf]
    %v95 = vld [vmem:[#allocation2 + $0x48] sm:$0xff]
    %v96 = vld [vmem:[#allocation2 + $0x50] sm:$0xff]
    %v97 = vld [vmem:[#allocation2 + $0x58] sm:$0xff]
    %v98 = vld [vmem:[#allocation2 + $0x60] sm:$0xff]
    %v99 = vld [vmem:[#allocation2 + $0x68] sm:$0xf]
    %v100 = vld [vmem:[#allocation2 + $0x6c] sm:$0xff]
    %v101 = vld [vmem:[#allocation2 + $0x74] sm:$0xff]
    %v102 = vld [vmem:[#allocation2 + $0x7c] sm:$0xff]
    %v103 = vld [vmem:[#allocation2 + $0x84] sm:$0xff]
    %v104 = vld [vmem:[#allocation2 + $0x8c] sm:$0xf]
    %v105 = vld [vmem:[#allocation5] sm:$0xff]
    %v106 = vld [vmem:[#allocation5 + $0x8] sm:$0xff]
    %v107 = vld [vmem:[#allocation5 + $0x10] sm:$0xff]
    %v108 = vld [vmem:[#allocation5 + $0x18] sm:$0xff]
    %v109 = vld [vmem:[#allocation5 + $0x20] sm:$0xff]
    %v110 = vld [vmem:[#allocation5 + $0x28] sm:$0xff]
    %v111 = vld [vmem:[#allocation5 + $0x30] sm:$0xff]
    %v112 = vld [vmem:[#allocation5 + $0x38] sm:$0xff]
    %v113 = vld [vmem:[#allocation5 + $0x40] sm:$0xff]
    %v114 = vld [vmem:[#allocation5 + $0x48] sm:$0xff]
    %v115 = vld [vmem:[#allocation5 + $0x50] sm:$0xff]
    %v116 = vld [vmem:[#allocation5 + $0x58] sm:$0xff]
    %v117 = vld [vmem:[#allocation5 + $0x60] sm:$0xff]
    %v118 = vld [vmem:[#allocation5 + $0x68] sm:$0xff]
    %v119 = vld [vmem:[#allocation5 + $0x70] sm:$0xff]
    %v120 = vld [vmem:[#allocation5 + $0x78] sm:$0xff]
    %v121 = vld [vmem:[#allocation5 + $0x80] sm:$0xff]
    %v122 = vld [vmem:[#allocation5 + $0x88] sm:$0xff]
    %v123 = vld [vmem:[#allocation5 + $0x90] sm:$0xff]
    %v124 = vld [vmem:[#allocation5 + $0x98] sm:$0xff]
    %v125 = vld [vmem:[#allocation5 + $0xa0] sm:$0xff]
    %v126 = vld [vmem:[#allocation5 + $0xa8] sm:$0xff]
    %v127 = vld [vmem:[#allocation5 + $0xb0] sm:$0xff]
    %v128 = vld [vmem:[#allocation5 + $0xb8] sm:$0xff]
    %v129 = vld [vmem:[#allocation5 + $0xc0] sm:$0xff]
    %v130 = vld [vmem:[#allocation5 + $0xc8] sm:$0xff]
    %v131 = vld [vmem:[#allocation5 + $0xd0] sm:$0xff]
    %v132 = vld [vmem:[#allocation5 + $0xd8] sm:$0xff]
    %v133 = vld [vmem:[#allocation5 + $0xe0] sm:$0xff]
    %v134 = vld [vmem:[#allocation5 + $0xe8] sm:$0xff]
    %v135 = vld [vmem:[#allocation5 + $0xf0] sm:$0xff]
    %v136 = vld [vmem:[#allocation5 + $0xf8] sm:$0xff]
    %v137 = vld [vmem:[#allocation5 + $0x100] sm:$0xff]
    %v138 = vld [vmem:[#allocation5 + $0x108] sm:$0xff]
    %v139 = vld [vmem:[#allocation5 + $0x110] sm:$0xff]
    %v140 = vld [vmem:[#allocation5 + $0x118] sm:$0xff]
    %v141 = vld [vmem:[#allocation5 + $0x120] sm:$0xff]
    %v142 = vld [vmem:[#allocation5 + $0x128] sm:$0xff]
    %v143 = vld [vmem:[#allocation5 + $0x130] sm:$0xff]
    %v144 = vld [vmem:[#allocation5 + $0x138] sm:$0xff]
    %v145 = vld [vmem:[#allocation5 + $0x140] sm:$0xff]
    %v146 = vld [vmem:[#allocation5 + $0x148] sm:$0xff]
    %v147 = vld [vmem:[#allocation5 + $0x150] sm:$0xff]
    %v148 = vld [vmem:[#allocation5 + $0x158] sm:$0xff]
    %v149 = vld [vmem:[#allocation5 + $0x160] sm:$0xff]
    %v150 = vld [vmem:[#allocation5 + $0x168] sm:$0xff]
    %v151 = vld [vmem:[#allocation5 + $0x170] sm:$0xff]
    %v152 = vld [vmem:[#allocation5 + $0x178] sm:$0xff]
    %v153 = vld [vmem:[#allocation5 + $0x180] sm:$0xff]
    %v154 = vld [vmem:[#allocation5 + $0x188] sm:$0xff]
    %v155 = vld [vmem:[#allocation5 + $0x190] sm:$0xff]
    %v156 = vld [vmem:[#allocation5 + $0x198] sm:$0xff]
    %v157 = vld [vmem:[#allocation5 + $0x1a0] sm:$0xff]
    %v158 = vld [vmem:[#allocation5 + $0x1a8] sm:$0xff]
    %v159 = vld [vmem:[#allocation5 + $0x1b0] sm:$0xff]
    %v160 = vld [vmem:[#allocation5 + $0x1b8] sm:$0xff]
    %v161 = vld [vmem:[#allocation5 + $0x1c0] sm:$0xff]
    %v162 = vld [vmem:[#allocation5 + $0x1c8] sm:$0xff]
    %v163 = vld [vmem:[#allocation5 + $0x1d0] sm:$0xff]
    %v164 = vld [vmem:[#allocation5 + $0x1d8] sm:$0xff]
    %v165 = vld [vmem:[#allocation5 + $0x1e0] sm:$0xff]
    %v166 = vld [vmem:[#allocation5 + $0x1e8] sm:$0xff]
    %v167 = vld [vmem:[#allocation5 + $0x1f0] sm:$0xff]
    %v168 = vld [vmem:[#allocation5 + $0x1f8] sm:$0xff]
    %v169 = vld [vmem:[#allocation5 + $0x200] sm:$0xff]
    %v170 = vld [vmem:[#allocation5 + $0x208] sm:$0xff]
    %v171 = vld [vmem:[#allocation5 + $0x210] sm:$0xff]
    %v172 = vld [vmem:[#allocation5 + $0x218] sm:$0xff]
    %v173 = vld [vmem:[#allocation5 + $0x220] sm:$0xff]
    %v174 = vld [vmem:[#allocation5 + $0x228] sm:$0xff]
    %v175 = vld [vmem:[#allocation5 + $0x230] sm:$0xff]
    %v176 = vld [vmem:[#allocation5 + $0x238] sm:$0xff]
    %v177 = vld [vmem:[#allocation5 + $0x240] sm:$0xff]
    %v178 = vld [vmem:[#allocation5 + $0x248] sm:$0xff]
    %v179 = vld [vmem:[#allocation5 + $0x250] sm:$0xff]
    %v180 = vld [vmem:[#allocation5 + $0x258] sm:$0xff]
    %v181 = vld [vmem:[#allocation5 + $0x260] sm:$0xff]
    %v182 = vld [vmem:[#allocation5 + $0x268] sm:$0xff]
    %v183 = vld [vmem:[#allocation5 + $0x270] sm:$0xff]
    %v184 = vld [vmem:[#allocation5 + $0x278] sm:$0xff]
    %v185 = vld [vmem:[#allocation5 + $0x280] sm:$0xff]
    %v186 = vld [vmem:[#allocation5 + $0x288] sm:$0xff]
    %v187 = vld [vmem:[#allocation5 + $0x290] sm:$0xff]
    %v188 = vld [vmem:[#allocation5 + $0x298] sm:$0xff]
    %v189 = vld [vmem:[#allocation5 + $0x2a0] sm:$0xff]
    %v190 = vld [vmem:[#allocation5 + $0x2a8] sm:$0xff]
    %v191 = vld [vmem:[#allocation5 + $0x2b0] sm:$0xff]
    %v192 = vld [vmem:[#allocation5 + $0x2b8] sm:$0xff]
    %v193 = vld [vmem:[#allocation5 + $0x2c0] sm:$0xff]
    %v194 = vld [vmem:[#allocation5 + $0x2c8] sm:$0xff]
    %v195 = vld [vmem:[#allocation5 + $0x2d0] sm:$0xff]
    %v196 = vld [vmem:[#allocation5 + $0x2d8] sm:$0xff]
    %v197 = vld [vmem:[#allocation5 + $0x2e0] sm:$0xff]
    %v198 = vld [vmem:[#allocation5 + $0x2e8] sm:$0xff]
    %v199 = vld [vmem:[#allocation5 + $0x2f0] sm:$0xff]
    %v200 = vld [vmem:[#allocation5 + $0x2f8] sm:$0xff]
    %v201 = vld [vmem:[#allocation5 + $0x300] sm:$0xff]
    %v202 = vld [vmem:[#allocation5 + $0x308] sm:$0xff]
    %v203 = vld [vmem:[#allocation5 + $0x310] sm:$0xff]
    %v204 = vld [vmem:[#allocation5 + $0x318] sm:$0xff]
    %v205 = vld [vmem:[#allocation5 + $0x320] sm:$0xff]
    %v206 = vld [vmem:[#allocation5 + $0x328] sm:$0xff]
    %v207 = vld [vmem:[#allocation5 + $0x330] sm:$0xff]
    %v208 = vld [vmem:[#allocation5 + $0x338] sm:$0xff]
    %v209 = vld [vmem:[#allocation5 + $0x340] sm:$0xff]
    %v210 = vld [vmem:[#allocation5 + $0x348] sm:$0xff]
    %v211 = vld [vmem:[#allocation5 + $0x350] sm:$0xff]
    %v212 = vld [vmem:[#allocation5 + $0x358] sm:$0xff]
    %v213 = vld [vmem:[#allocation5 + $0x360] sm:$0xff]
    %v214 = vld [vmem:[#allocation5 + $0x368] sm:$0xff]
    %v215 = vld [vmem:[#allocation5 + $0x370] sm:$0xff]
    %v216 = vld [vmem:[#allocation5 + $0x378] sm:$0xff]
    %v217 = vld [vmem:[#allocation5 + $0x380] sm:$0xff]
    %v218 = vld [vmem:[#allocation5 + $0x388] sm:$0xff]
    %v219 = vld [vmem:[#allocation5 + $0x390] sm:$0xff]
    %v220 = vld [vmem:[#allocation5 + $0x398] sm:$0xff]
    %v221 = vld [vmem:[#allocation5 + $0x3a0] sm:$0xff]
    %v222 = vld [vmem:[#allocation5 + $0x3a8] sm:$0xff]
    %v223 = vld [vmem:[#allocation5 + $0x3b0] sm:$0xff]
    %v224 = vld [vmem:[#allocation5 + $0x3b8] sm:$0xff]
    %v225 = vld [vmem:[#allocation5 + $0x3c0] sm:$0xff]
    %v226 = vld [vmem:[#allocation5 + $0x3c8] sm:$0xff]
    %v227 = vld [vmem:[#allocation5 + $0x3d0] sm:$0xff]
    %v228 = vld [vmem:[#allocation5 + $0x3d8] sm:$0xff]
    %v229 = vld [vmem:[#allocation5 + $0x3e0] sm:$0xff]
    %v230 = vld [vmem:[#allocation5 + $0x3e8] sm:$0xff]
    %v231 = vld [vmem:[#allocation5 + $0x3f0] sm:$0xff]
    %v232 = vld [vmem:[#allocation5 + $0x3f8] sm:$0xff]
    %v233 = vld [vmem:[#allocation5 + $0x400] sm:$0xff]
    %v234 = vld [vmem:[#allocation5 + $0x408] sm:$0xff]
    %v235 = vld [vmem:[#allocation5 + $0x410] sm:$0xff]
    %v236 = vld [vmem:[#allocation5 + $0x418] sm:$0xff]
    %v237 = vld [vmem:[#allocation5 + $0x420] sm:$0xff]
    %v238 = vld [vmem:[#allocation5 + $0x428] sm:$0xff]
    %v239 = vld [vmem:[#allocation5 + $0x430] sm:$0xff]
    %v240 = vld [vmem:[#allocation5 + $0x438] sm:$0xff]
    %v241 = vld [vmem:[#allocation5 + $0x440] sm:$0xff]
    %v242 = vld [vmem:[#allocation5 + $0x448] sm:$0xff]
    %v243 = vld [vmem:[#allocation5 + $0x450] sm:$0xff]
    %v244 = vld [vmem:[#allocation5 + $0x458] sm:$0xff]
    %v245 = vld [vmem:[#allocation5 + $0x460] sm:$0xff]
    %v246 = vld [vmem:[#allocation5 + $0x468] sm:$0xff]
    %v247 = vld [vmem:[#allocation5 + $0x470] sm:$0xff]
    %v248 = vld [vmem:[#allocation5 + $0x478] sm:$0xff]
    %v249 = vld [vmem:[#allocation5 + $0x480] sm:$0xff]
    %v250 = vld [vmem:[#allocation5 + $0x488] sm:$0xff]
    %v251 = vld [vmem:[#allocation5 + $0x490] sm:$0xff]
    %v252 = vld [vmem:[#allocation5 + $0x498] sm:$0xff]
    %v253 = vld [vmem:[#allocation5 + $0x4a0] sm:$0xff]
    %v254 = vld [vmem:[#allocation5 + $0x4a8] sm:$0xff]
    %v255 = vld [vmem:[#allocation5 + $0x4b0] sm:$0xff]
    %v256 = vld [vmem:[#allocation5 + $0x4b8] sm:$0xff]
    %v257 = vld [vmem:[#allocation5 + $0x4c0] sm:$0xff]
    %v258 = vld [vmem:[#allocation5 + $0x4c8] sm:$0xff]
    %v259 = vld [vmem:[#allocation5 + $0x4d0] sm:$0xff]
    %v260 = vld [vmem:[#allocation5 + $0x4d8] sm:$0xff]
    %v261 = vld [vmem:[#allocation5 + $0x4e0] sm:$0xff]
    %v262 = vld [vmem:[#allocation5 + $0x4e8] sm:$0xff]
    %v263 = vld [vmem:[#allocation5 + $0x4f0] sm:$0xff]
    %v264 = vld [vmem:[#allocation5 + $0x4f8] sm:$0xff]
    %v265 = vld [vmem:[#allocation5 + $0x500] sm:$0xff]
    %v266 = vld [vmem:[#allocation5 + $0x508] sm:$0xff]
    %v267 = vld [vmem:[#allocation5 + $0x510] sm:$0xff]
    %v268 = vld [vmem:[#allocation5 + $0x518] sm:$0xff]
    %v269 = vld [vmem:[#allocation5 + $0x520] sm:$0xff]
    %v270 = vld [vmem:[#allocation5 + $0x528] sm:$0xff]
    %v271 = vld [vmem:[#allocation5 + $0x530] sm:$0xff]
    %v272 = vld [vmem:[#allocation5 + $0x538] sm:$0xff]
    %v273 = vld [vmem:[#allocation5 + $0x540] sm:$0xff]
    %v274 = vld [vmem:[#allocation5 + $0x548] sm:$0xff]
    %v275 = vld [vmem:[#allocation5 + $0x550] sm:$0xff]
    %v276 = vld [vmem:[#allocation5 + $0x558] sm:$0xff]
    %v277 = vld [vmem:[#allocation5 + $0x560] sm:$0xff]
    %v278 = vld [vmem:[#allocation5 + $0x568] sm:$0xff]
    %v279 = vld [vmem:[#allocation5 + $0x570] sm:$0xff]
    %v280 = vld [vmem:[#allocation5 + $0x578] sm:$0xff]
    %v281 = vld [vmem:[#allocation5 + $0x580] sm:$0xff]
    %v282 = vld [vmem:[#allocation5 + $0x588] sm:$0xff]
    %v283 = vld [vmem:[#allocation5 + $0x590] sm:$0xff]
    %v284 = vld [vmem:[#allocation5 + $0x598] sm:$0xff]
    %v285 = vld [vmem:[#allocation5 + $0x5a0] sm:$0xff]
    %v286 = vld [vmem:[#allocation5 + $0x5a8] sm:$0xff]
    %v287 = vld [vmem:[#allocation5 + $0x5b0] sm:$0xff]
    %v288 = vld [vmem:[#allocation5 + $0x5b8] sm:$0xff]
    %v289 = vld [vmem:[#allocation5 + $0x5c0] sm:$0xff]
    %v290 = vld [vmem:[#allocation5 + $0x5c8] sm:$0xff]
    %v291 = vld [vmem:[#allocation5 + $0x5d0] sm:$0xff]
    %v292 = vld [vmem:[#allocation5 + $0x5d8] sm:$0xff]
    %v293 = vld [vmem:[#allocation5 + $0x5e0] sm:$0xff]
    %v294 = vld [vmem:[#allocation5 + $0x5e8] sm:$0xff]
    %v295 = vld [vmem:[#allocation5 + $0x5f0] sm:$0xff]
    %v296 = vld [vmem:[#allocation5 + $0x5f8] sm:$0xff]
    %v297 = vld [vmem:[#allocation5 + $0x600] sm:$0xff]
    %v298 = vld [vmem:[#allocation5 + $0x608] sm:$0xff]
    %v299 = vld [vmem:[#allocation5 + $0x610] sm:$0xff]
    %v300 = vld [vmem:[#allocation5 + $0x618] sm:$0xff]
    %v301 = vld [vmem:[#allocation5 + $0x620] sm:$0xff]
    %v302 = vld [vmem:[#allocation5 + $0x628] sm:$0xff]
    %v303 = vld [vmem:[#allocation5 + $0x630] sm:$0xff]
    %v304 = vld [vmem:[#allocation5 + $0x638] sm:$0xff]
    %v305 = vld [vmem:[#allocation5 + $0x640] sm:$0xff]
    %v306 = vld [vmem:[#allocation5 + $0x648] sm:$0xff]
    %v307 = vld [vmem:[#allocation5 + $0x650] sm:$0xff]
    %v308 = vld [vmem:[#allocation5 + $0x658] sm:$0xff]
    %v309 = vld [vmem:[#allocation5 + $0x660] sm:$0xff]
    %v310 = vld [vmem:[#allocation5 + $0x668] sm:$0xff]
    %v311 = vld [vmem:[#allocation5 + $0x670] sm:$0xff]
    %v312 = vld [vmem:[#allocation5 + $0x678] sm:$0xff]
    %v313 = vld [vmem:[#allocation5 + $0x680] sm:$0xff]
    %v314 = vld [vmem:[#allocation5 + $0x688] sm:$0xff]
    %v315 = vld [vmem:[#allocation5 + $0x690] sm:$0xff]
    %v316 = vld [vmem:[#allocation5 + $0x698] sm:$0xff]
    %v317 = vld [vmem:[#allocation5 + $0x6a0] sm:$0xff]
    %v318 = vld [vmem:[#allocation5 + $0x6a8] sm:$0xff]
    %v319 = vld [vmem:[#allocation5 + $0x6b0] sm:$0xff]
    %v320 = vld [vmem:[#allocation5 + $0x6b8] sm:$0xff]
    %v321 = vld [vmem:[#allocation5 + $0x6c0] sm:$0xff]
    %v322 = vld [vmem:[#allocation5 + $0x6c8] sm:$0xff]
    %v323 = vld [vmem:[#allocation5 + $0x6d0] sm:$0xff]
    %v324 = vld [vmem:[#allocation5 + $0x6d8] sm:$0xff]
    %v325 = vld [vmem:[#allocation5 + $0x6e0] sm:$0xff]
    %v326 = vld [vmem:[#allocation5 + $0x6e8] sm:$0xff]
    %v327 = vld [vmem:[#allocation5 + $0x6f0] sm:$0xff]
    %v328 = vld [vmem:[#allocation5 + $0x6f8] sm:$0xff]
    %v329 = vld [vmem:[#allocation5 + $0x700] sm:$0xff]
    %v330 = vld [vmem:[#allocation5 + $0x708] sm:$0xff]
    %v331 = vld [vmem:[#allocation5 + $0x710] sm:$0xff]
    %v332 = vld [vmem:[#allocation5 + $0x718] sm:$0xff]
    %v333 = vld [vmem:[#allocation5 + $0x720] sm:$0xff]
    %v334 = vld [vmem:[#allocation5 + $0x728] sm:$0xff]
    %v335 = vld [vmem:[#allocation5 + $0x730] sm:$0xff]
    %v336 = vld [vmem:[#allocation5 + $0x738] sm:$0xff]
    %v337 = vld [vmem:[#allocation5 + $0x740] sm:$0xff]
    %v338 = vld [vmem:[#allocation5 + $0x748] sm:$0xff]
    %v339 = vld [vmem:[#allocation5 + $0x750] sm:$0xff]
    %v340 = vld [vmem:[#allocation5 + $0x758] sm:$0xff]
    %v341 = vld [vmem:[#allocation5 + $0x760] sm:$0xff]
    %v342 = vld [vmem:[#allocation5 + $0x768] sm:$0xff]
    %v343 = vld [vmem:[#allocation5 + $0x770] sm:$0xff]
    %v344 = vld [vmem:[#allocation5 + $0x778] sm:$0xff]
    %v345 = vld [vmem:[#allocation5 + $0x780] sm:$0xff]
    %v346 = vld [vmem:[#allocation5 + $0x788] sm:$0xff]
    %v347 = vld [vmem:[#allocation5 + $0x790] sm:$0xff]
    %v348 = vld [vmem:[#allocation5 + $0x798] sm:$0xff]
    %v349 = vld [vmem:[#allocation5 + $0x7a0] sm:$0xff]
    %v350 = vld [vmem:[#allocation5 + $0x7a8] sm:$0xff]
    %v351 = vld [vmem:[#allocation5 + $0x7b0] sm:$0xff]
    %v352 = vld [vmem:[#allocation5 + $0x7b8] sm:$0xff]
    %v353 = vld [vmem:[#allocation5 + $0x7c0] sm:$0xff]
    %v354 = vld [vmem:[#allocation5 + $0x7c8] sm:$0xff]
    %v355 = vld [vmem:[#allocation5 + $0x7d0] sm:$0xff]
    %v356 = vld [vmem:[#allocation5 + $0x7d8] sm:$0xff]
    %v357 = vld [vmem:[#allocation5 + $0x7e0] sm:$0xff]
    %v358 = vld [vmem:[#allocation5 + $0x7e8] sm:$0xff]
    %v359 = vld [vmem:[#allocation5 + $0x7f0] sm:$0xff]
    %v360 = vld [vmem:[#allocation5 + $0x7f8] sm:$0xff]
    %v361 = vld [vmem:[#allocation5 + $0x800] sm:$0xff]
    %v362 = vld [vmem:[#allocation5 + $0x808] sm:$0xff]
    %v363 = vld [vmem:[#allocation5 + $0x810] sm:$0xff]
    %v364 = vld [vmem:[#allocation5 + $0x818] sm:$0xff]
    %v365 = vld [vmem:[#allocation5 + $0x820] sm:$0xff]
    %v366 = vld [vmem:[#allocation5 + $0x828] sm:$0xff]
    %v367 = vld [vmem:[#allocation5 + $0x830] sm:$0xff]
    %v368 = vld [vmem:[#allocation5 + $0x838] sm:$0xff]
    %v369 = vld [vmem:[#allocation5 + $0x840] sm:$0xff]
    %v370 = vld [vmem:[#allocation5 + $0x848] sm:$0xff]
    %v371 = vld [vmem:[#allocation5 + $0x850] sm:$0xff]
    %v372 = vld [vmem:[#allocation5 + $0x858] sm:$0xff]
    %v373 = vld [vmem:[#allocation5 + $0x860] sm:$0xff]
    %v374 = vld [vmem:[#allocation5 + $0x868] sm:$0xff]
    %v375 = vld [vmem:[#allocation5 + $0x870] sm:$0xff]
    %v376 = vld [vmem:[#allocation5 + $0x878] sm:$0xff]
    %v377 = vld [vmem:[#allocation5 + $0x880] sm:$0xff]
    %v378 = vld [vmem:[#allocation5 + $0x888] sm:$0xff]
    %v379 = vld [vmem:[#allocation5 + $0x890] sm:$0xff]
    %v380 = vld [vmem:[#allocation5 + $0x898] sm:$0xff]
    %v381 = vld [vmem:[#allocation5 + $0x8a0] sm:$0xff]
    %v382 = vld [vmem:[#allocation5 + $0x8a8] sm:$0xff]
    %v383 = vld [vmem:[#allocation5 + $0x8b0] sm:$0xff]
    %v384 = vld [vmem:[#allocation5 + $0x8b8] sm:$0xff]
    %v385 = vld [vmem:[#allocation5 + $0x8c0] sm:$0xff]
    %v386 = vld [vmem:[#allocation5 + $0x8c8] sm:$0xff]
    %v387 = vld [vmem:[#allocation5 + $0x8d0] sm:$0xff]
    %v388 = vld [vmem:[#allocation5 + $0x8d8] sm:$0xff]
    %v389 = vld [vmem:[#allocation5 + $0x8e0] sm:$0xff]
    %v390 = vld [vmem:[#allocation5 + $0x8e8] sm:$0xff]
    %v391 = vld [vmem:[#allocation5 + $0x8f0] sm:$0xff]
    %v392 = vld [vmem:[#allocation5 + $0x8f8] sm:$0xff]
    %v393 = vld [vmem:[#allocation7] sm:$0x1]
    %v395 = vlaneseq
    %v396 = vshrl.u32 %v395, 7
    %v397 = vsub.s32 0, %v396
    %v398 = vrot.slane %v393, %v397
    %v420 = vcombine.low %v85, %v90
    %v421 = vcombine.high %v85, %v90
    %v422 = vcombine.low %v95, %v100
    %v423 = vcombine.high %v95, %v100
    %v425 = vunpack.c.l.s4 1983009808
    %v426 = vunpack.c.0.s8 %v425
    %v427 = vlaneseq
    %v428 = vshrl.u32 %v427, 7
    %v429 = vsub.s32 %v426, %v428
    %v430 = vrot.slane %v420, %v429
    %v432 = vunpack.c.l.s4 1983009808
    %v433 = vunpack.c.0.s8 %v432
    %v434 = vlaneseq
    %v435 = vshrl.u32 %v434, 7
    %v436 = vsub.s32 %v433, %v435
    %v437 = vrot.slane %v421, %v436
    %v439 = vunpack.c.l.s4 1983009808
    %v440 = vunpack.c.0.s8 %v439
    %v441 = vlaneseq
    %v442 = vshrl.u32 %v441, 7
    %v443 = vsub.s32 %v440, %v442
    %v444 = vrot.slane %v422, %v443
    %v446 = vunpack.c.l.s4 1983009808
    %v447 = vunpack.c.0.s8 %v446
    %v448 = vlaneseq
    %v449 = vshrl.u32 %v448, 7
    %v450 = vsub.s32 %v447, %v449
    %v451 = vrot.slane %v423, %v450
    %v452 = vcombine.low %v430, %v444
    %v453 = vcombine.high %v430, %v444
    %v454 = vcombine.low %v437, %v451
    %v455 = vcombine.high %v437, %v451
    %v456 = vcombine.low %v86, %v91
    %v457 = vcombine.high %v86, %v91
    %v458 = vcombine.low %v96, %v101
    %v459 = vcombine.high %v96, %v101
    %v461 = vunpack.c.l.s4 1983009808
    %v462 = vunpack.c.0.s8 %v461
    %v463 = vlaneseq
    %v464 = vshrl.u32 %v463, 7
    %v465 = vsub.s32 %v462, %v464
    %v466 = vrot.slane %v456, %v465
    %v468 = vunpack.c.l.s4 1983009808
    %v469 = vunpack.c.0.s8 %v468
    %v470 = vlaneseq
    %v471 = vshrl.u32 %v470, 7
    %v472 = vsub.s32 %v469, %v471
    %v473 = vrot.slane %v457, %v472
    %v475 = vunpack.c.l.s4 1983009808
    %v476 = vunpack.c.0.s8 %v475
    %v477 = vlaneseq
    %v478 = vshrl.u32 %v477, 7
    %v479 = vsub.s32 %v476, %v478
    %v480 = vrot.slane %v458, %v479
    %v482 = vunpack.c.l.s4 1983009808
    %v483 = vunpack.c.0.s8 %v482
    %v484 = vlaneseq
    %v485 = vshrl.u32 %v484, 7
    %v486 = vsub.s32 %v483, %v485
    %v487 = vrot.slane %v459, %v486
    %v488 = vcombine.low %v466, %v480
    %v489 = vcombine.high %v466, %v480
    %v490 = vcombine.low %v473, %v487
    %v491 = vcombine.high %v473, %v487
    %v492 = vcombine.low %v87, %v92
    %v493 = vcombine.high %v87, %v92
    %v494 = vcombine.low %v97, %v102
    %v495 = vcombine.high %v97, %v102
    %v497 = vunpack.c.l.s4 1983009808
    %v498 = vunpack.c.0.s8 %v497
    %v499 = vlaneseq
    %v500 = vshrl.u32 %v499, 7
    %v501 = vsub.s32 %v498, %v500
    %v502 = vrot.slane %v492, %v501
    %v504 = vunpack.c.l.s4 1983009808
    %v505 = vunpack.c.0.s8 %v504
    %v506 = vlaneseq
    %v507 = vshrl.u32 %v506, 7
    %v508 = vsub.s32 %v505, %v507
    %v509 = vrot.slane %v493, %v508
    %v511 = vunpack.c.l.s4 1983009808
    %v512 = vunpack.c.0.s8 %v511
    %v513 = vlaneseq
    %v514 = vshrl.u32 %v513, 7
    %v515 = vsub.s32 %v512, %v514
    %v516 = vrot.slane %v494, %v515
    %v518 = vunpack.c.l.s4 1983009808
    %v519 = vunpack.c.0.s8 %v518
    %v520 = vlaneseq
    %v521 = vshrl.u32 %v520, 7
    %v522 = vsub.s32 %v519, %v521
    %v523 = vrot.slane %v495, %v522
    %v524 = vcombine.low %v502, %v516
    %v525 = vcombine.high %v502, %v516
    %v526 = vcombine.low %v509, %v523
    %v527 = vcombine.high %v509, %v523
    %v528 = vcombine.low %v88, %v93
    %v529 = vcombine.high %v88, %v93
    %v530 = vcombine.low %v98, %v103
    %v531 = vcombine.high %v98, %v103
    %v533 = vunpack.c.l.s4 1983009808
    %v534 = vunpack.c.0.s8 %v533
    %v535 = vlaneseq
    %v536 = vshrl.u32 %v535, 7
    %v537 = vsub.s32 %v534, %v536
    %v538 = vrot.slane %v528, %v537
    %v540 = vunpack.c.l.s4 1983009808
    %v541 = vunpack.c.0.s8 %v540
    %v542 = vlaneseq
    %v543 = vshrl.u32 %v542, 7
    %v544 = vsub.s32 %v541, %v543
    %v545 = vrot.slane %v529, %v544
    %v547 = vunpack.c.l.s4 1983009808
    %v548 = vunpack.c.0.s8 %v547
    %v549 = vlaneseq
    %v550 = vshrl.u32 %v549, 7
    %v551 = vsub.s32 %v548, %v550
    %v552 = vrot.slane %v530, %v551
    %v554 = vunpack.c.l.s4 1983009808
    %v555 = vunpack.c.0.s8 %v554
    %v556 = vlaneseq
    %v557 = vshrl.u32 %v556, 7
    %v558 = vsub.s32 %v555, %v557
    %v559 = vrot.slane %v531, %v558
    %v560 = vcombine.low %v538, %v552
    %v561 = vcombine.high %v538, %v552
    %v562 = vcombine.low %v545, %v559
    %v563 = vcombine.high %v545, %v559
    %v564 = vcombine.low %v89, %v94
    %v565 = vcombine.low %v99, %v104
    %v567 = vunpack.c.l.s4 1983009808
    %v568 = vunpack.c.0.s8 %v567
    %v569 = vlaneseq
    %v570 = vshrl.u32 %v569, 7
    %v571 = vsub.s32 %v568, %v570
    %v572 = vrot.slane %v564, %v571
    %v574 = vunpack.c.l.s4 1983009808
    %v575 = vunpack.c.0.s8 %v574
    %v576 = vlaneseq
    %v577 = vshrl.u32 %v576, 7
    %v578 = vsub.s32 %v575, %v577
    %v579 = vrot.slane %v565, %v578
    %v580 = vcombine.low %v572, %v579
    %v581 = vcombine.high %v572, %v579
    %600 = vmatprep.subr.mxu0 0.0
    %601 = vmatpush1.msra.mxu0 %v120
    %602 = vmatprep.subr.mxu0 0.0
    %603 = vmatpush1.msra.mxu0 %v119
    %604 = vmatprep.subr.mxu0 0.0
    %605 = vmatpush1.msra.mxu0 %v118
    %606 = vmatprep.subr.mxu0 0.0
    %607 = vmatpush1.msra.mxu0 %v117
    %608 = vmatprep.subr.mxu0 0.0
    %609 = vmatpush1.msra.mxu0 %v116
    %610 = vmatprep.subr.mxu0 0.0
    %611 = vmatpush1.msra.mxu0 %v115
    %612 = vmatprep.subr.mxu0 0.0
    %613 = vmatpush1.msra.mxu0 %v114
    %614 = vmatprep.subr.mxu0 0.0
    %615 = vmatpush1.msra.mxu0 %v113
    %616 = vmatprep.subr.mxu0 0.0
    %617 = vmatpush1.msra.mxu0 %v112
    %618 = vmatprep.subr.mxu0 0.0
    %619 = vmatpush1.msra.mxu0 %v111
    %620 = vmatprep.subr.mxu0 0.0
    %621 = vmatpush1.msra.mxu0 %v110
    %622 = vmatprep.subr.mxu0 0.0
    %623 = vmatpush1.msra.mxu0 %v109
    %624 = vmatprep.subr.mxu0 0.0
    %625 = vmatpush1.msra.mxu0 %v108
    %626 = vmatprep.subr.mxu0 0.0
    %627 = vmatpush1.msra.mxu0 %v107
    %628 = vmatprep.subr.mxu0 0.0
    %629 = vmatpush1.msra.mxu0 %v106
    %630 = vmatprep.subr.mxu0 0.0
    %631 = vmatpush1.msra.mxu0 %v105
    %632 = vmatprep.subr.mxu0 0.0
    %633 = vmatpush2.msra.mxu0 %v136
    %634 = vmatprep.subr.mxu0 0.0
    %635 = vmatpush2.msra.mxu0 %v135
    %636 = vmatprep.subr.mxu0 0.0
    %637 = vmatpush2.msra.mxu0 %v134
    %638 = vmatprep.subr.mxu0 0.0
    %639 = vmatpush2.msra.mxu0 %v133
    %640 = vmatprep.subr.mxu0 0.0
    %641 = vmatpush2.msra.mxu0 %v132
    %642 = vmatprep.subr.mxu0 0.0
    %643 = vmatpush2.msra.mxu0 %v131
    %644 = vmatprep.subr.mxu0 0.0
    %645 = vmatpush2.msra.mxu0 %v130
    %646 = vmatprep.subr.mxu0 0.0
    %647 = vmatpush2.msra.mxu0 %v129
    %648 = vmatprep.subr.mxu0 0.0
    %649 = vmatpush2.msra.mxu0 %v128
    %650 = vmatprep.subr.mxu0 0.0
    %651 = vmatpush2.msra.mxu0 %v127
    %652 = vmatprep.subr.mxu0 0.0
    %653 = vmatpush2.msra.mxu0 %v126
    %654 = vmatprep.subr.mxu0 0.0
    %655 = vmatpush2.msra.mxu0 %v125
    %656 = vmatprep.subr.mxu0 0.0
    %657 = vmatpush2.msra.mxu0 %v124
    %658 = vmatprep.subr.mxu0 0.0
    %659 = vmatpush2.msra.mxu0 %v123
    %660 = vmatprep.subr.mxu0 0.0
    %661 = vmatpush2.msra.mxu0 %v122
    %662 = vmatprep.subr.mxu0 0.0
    %663 = vmatpush2.msra.mxu0 %v121
    %664 = vmatprep.mubr.f32.mxu0 %v453
    %665 = vmatmul.mubr.f32.gmra.mxu0 %v452
    %v666 = vpop.f32.mrf.mxu0
    %v667 = vadd.f32 %v398, %v666
    %v668 = vpop.f32.mrf.mxu0
    %669 = vdwg.mxu0
    %670 = vmatprep.subr.mxu0 0.0
    %671 = vmatpush1.msra.mxu0 %v152
    %672 = vmatprep.subr.mxu0 0.0
    %673 = vmatpush1.msra.mxu0 %v151
    %674 = vmatprep.subr.mxu0 0.0
    %675 = vmatpush1.msra.mxu0 %v150
    %676 = vmatprep.subr.mxu0 0.0
    %677 = vmatpush1.msra.mxu0 %v149
    %678 = vmatprep.subr.mxu0 0.0
    %679 = vmatpush1.msra.mxu0 %v148
    %680 = vmatprep.subr.mxu0 0.0
    %681 = vmatpush1.msra.mxu0 %v147
    %682 = vmatprep.subr.mxu0 0.0
    %683 = vmatpush1.msra.mxu0 %v146
    %684 = vmatprep.subr.mxu0 0.0
    %685 = vmatpush1.msra.mxu0 %v145
    %686 = vmatprep.subr.mxu0 0.0
    %687 = vmatpush1.msra.mxu0 %v144
    %688 = vmatprep.subr.mxu0 0.0
    %689 = vmatpush1.msra.mxu0 %v143
    %690 = vmatprep.subr.mxu0 0.0
    %691 = vmatpush1.msra.mxu0 %v142
    %692 = vmatprep.subr.mxu0 0.0
    %693 = vmatpush1.msra.mxu0 %v141
    %694 = vmatprep.subr.mxu0 0.0
    %695 = vmatpush1.msra.mxu0 %v140
    %696 = vmatprep.subr.mxu0 0.0
    %697 = vmatpush1.msra.mxu0 %v139
    %698 = vmatprep.subr.mxu0 0.0
    %699 = vmatpush1.msra.mxu0 %v138
    %700 = vmatprep.subr.mxu0 0.0
    %701 = vmatpush1.msra.mxu0 %v137
    %702 = vmatprep.subr.mxu0 0.0
    %703 = vmatpush2.msra.mxu0 %v168
    %704 = vmatprep.subr.mxu0 0.0
    %705 = vmatpush2.msra.mxu0 %v167
    %706 = vmatprep.subr.mxu0 0.0
    %707 = vmatpush2.msra.mxu0 %v166
    %708 = vmatprep.subr.mxu0 0.0
    %709 = vmatpush2.msra.mxu0 %v165
    %710 = vmatprep.subr.mxu0 0.0
    %711 = vmatpush2.msra.mxu0 %v164
    %712 = vmatprep.subr.mxu0 0.0
    %713 = vmatpush2.msra.mxu0 %v163
    %714 = vmatprep.subr.mxu0 0.0
    %715 = vmatpush2.msra.mxu0 %v162
    %716 = vmatprep.subr.mxu0 0.0
    %717 = vmatpush2.msra.mxu0 %v161
    %718 = vmatprep.subr.mxu0 0.0
    %719 = vmatpush2.msra.mxu0 %v160
    %720 = vmatprep.subr.mxu0 0.0
    %721 = vmatpush2.msra.mxu0 %v159
    %722 = vmatprep.subr.mxu0 0.0
    %723 = vmatpush2.msra.mxu0 %v158
    %724 = vmatprep.subr.mxu0 0.0
    %725 = vmatpush2.msra.mxu0 %v157
    %726 = vmatprep.subr.mxu0 0.0
    %727 = vmatpush2.msra.mxu0 %v156
    %728 = vmatprep.subr.mxu0 0.0
    %729 = vmatpush2.msra.mxu0 %v155
    %730 = vmatprep.subr.mxu0 0.0
    %731 = vmatpush2.msra.mxu0 %v154
    %732 = vmatprep.subr.mxu0 0.0
    %733 = vmatpush2.msra.mxu0 %v153
    %734 = vmatprep.mubr.f32.mxu0 %v455
    %735 = vmatmul.mubr.f32.gmra.mxu0 %v454
    %v736 = vpop.f32.mrf.mxu0
    %v737 = vadd.f32 %v667, %v736
    %v738 = vpop.f32.mrf.mxu0
    %739 = vdwg.mxu0
    %740 = vmatprep.subr.mxu0 0.0
    %741 = vmatpush1.msra.mxu0 %v184
    %742 = vmatprep.subr.mxu0 0.0
    %743 = vmatpush1.msra.mxu0 %v183
    %744 = vmatprep.subr.mxu0 0.0
    %745 = vmatpush1.msra.mxu0 %v182
    %746 = vmatprep.subr.mxu0 0.0
    %747 = vmatpush1.msra.mxu0 %v181
    %748 = vmatprep.subr.mxu0 0.0
    %749 = vmatpush1.msra.mxu0 %v180
    %750 = vmatprep.subr.mxu0 0.0
    %751 = vmatpush1.msra.mxu0 %v179
    %752 = vmatprep.subr.mxu0 0.0
    %753 = vmatpush1.msra.mxu0 %v178
    %754 = vmatprep.subr.mxu0 0.0
    %755 = vmatpush1.msra.mxu0 %v177
    %756 = vmatprep.subr.mxu0 0.0
    %757 = vmatpush1.msra.mxu0 %v176
    %758 = vmatprep.subr.mxu0 0.0
    %759 = vmatpush1.msra.mxu0 %v175
    %760 = vmatprep.subr.mxu0 0.0
    %761 = vmatpush1.msra.mxu0 %v174
    %762 = vmatprep.subr.mxu0 0.0
    %763 = vmatpush1.msra.mxu0 %v173
    %764 = vmatprep.subr.mxu0 0.0
    %765 = vmatpush1.msra.mxu0 %v172
    %766 = vmatprep.subr.mxu0 0.0
    %767 = vmatpush1.msra.mxu0 %v171
    %768 = vmatprep.subr.mxu0 0.0
    %769 = vmatpush1.msra.mxu0 %v170
    %770 = vmatprep.subr.mxu0 0.0
    %771 = vmatpush1.msra.mxu0 %v169
    %772 = vmatprep.subr.mxu0 0.0
    %773 = vmatpush2.msra.mxu0 %v200
    %774 = vmatprep.subr.mxu0 0.0
    %775 = vmatpush2.msra.mxu0 %v199
    %776 = vmatprep.subr.mxu0 0.0
    %777 = vmatpush2.msra.mxu0 %v198
    %778 = vmatprep.subr.mxu0 0.0
    %779 = vmatpush2.msra.mxu0 %v197
    %780 = vmatprep.subr.mxu0 0.0
    %781 = vmatpush2.msra.mxu0 %v196
    %782 = vmatprep.subr.mxu0 0.0
    %783 = vmatpush2.msra.mxu0 %v195
    %784 = vmatprep.subr.mxu0 0.0
    %785 = vmatpush2.msra.mxu0 %v194
    %786 = vmatprep.subr.mxu0 0.0
    %787 = vmatpush2.msra.mxu0 %v193
    %788 = vmatprep.subr.mxu0 0.0
    %789 = vmatpush2.msra.mxu0 %v192
    %790 = vmatprep.subr.mxu0 0.0
    %791 = vmatpush2.msra.mxu0 %v191
    %792 = vmatprep.subr.mxu0 0.0
    %793 = vmatpush2.msra.mxu0 %v190
    %794 = vmatprep.subr.mxu0 0.0
    %795 = vmatpush2.msra.mxu0 %v189
    %796 = vmatprep.subr.mxu0 0.0
    %797 = vmatpush2.msra.mxu0 %v188
    %798 = vmatprep.subr.mxu0 0.0
    %799 = vmatpush2.msra.mxu0 %v187
    %800 = vmatprep.subr.mxu0 0.0
    %801 = vmatpush2.msra.mxu0 %v186
    %802 = vmatprep.subr.mxu0 0.0
    %803 = vmatpush2.msra.mxu0 %v185
    %804 = vmatprep.mubr.f32.mxu0 %v489
    %805 = vmatmul.mubr.f32.gmra.mxu0 %v488
    %v806 = vpop.f32.mrf.mxu0
    %v807 = vadd.f32 %v737, %v806
    %v808 = vpop.f32.mrf.mxu0
    %809 = vdwg.mxu0
    %810 = vmatprep.subr.mxu0 0.0
    %811 = vmatpush1.msra.mxu0 %v216
    %812 = vmatprep.subr.mxu0 0.0
    %813 = vmatpush1.msra.mxu0 %v215
    %814 = vmatprep.subr.mxu0 0.0
    %815 = vmatpush1.msra.mxu0 %v214
    %816 = vmatprep.subr.mxu0 0.0
    %817 = vmatpush1.msra.mxu0 %v213
    %818 = vmatprep.subr.mxu0 0.0
    %819 = vmatpush1.msra.mxu0 %v212
    %820 = vmatprep.subr.mxu0 0.0
    %821 = vmatpush1.msra.mxu0 %v211
    %822 = vmatprep.subr.mxu0 0.0
    %823 = vmatpush1.msra.mxu0 %v210
    %824 = vmatprep.subr.mxu0 0.0
    %825 = vmatpush1.msra.mxu0 %v209
    %826 = vmatprep.subr.mxu0 0.0
    %827 = vmatpush1.msra.mxu0 %v208
    %828 = vmatprep.subr.mxu0 0.0
    %829 = vmatpush1.msra.mxu0 %v207
    %830 = vmatprep.subr.mxu0 0.0
    %831 = vmatpush1.msra.mxu0 %v206
    %832 = vmatprep.subr.mxu0 0.0
    %833 = vmatpush1.msra.mxu0 %v205
    %834 = vmatprep.subr.mxu0 0.0
    %835 = vmatpush1.msra.mxu0 %v204
    %836 = vmatprep.subr.mxu0 0.0
    %837 = vmatpush1.msra.mxu0 %v203
    %838 = vmatprep.subr.mxu0 0.0
    %839 = vmatpush1.msra.mxu0 %v202
    %840 = vmatprep.subr.mxu0 0.0
    %841 = vmatpush1.msra.mxu0 %v201
    %842 = vmatprep.subr.mxu0 0.0
    %843 = vmatpush2.msra.mxu0 %v232
    %844 = vmatprep.subr.mxu0 0.0
    %845 = vmatpush2.msra.mxu0 %v231
    %846 = vmatprep.subr.mxu0 0.0
    %847 = vmatpush2.msra.mxu0 %v230
    %848 = vmatprep.subr.mxu0 0.0
    %849 = vmatpush2.msra.mxu0 %v229
    %850 = vmatprep.subr.mxu0 0.0
    %851 = vmatpush2.msra.mxu0 %v228
    %852 = vmatprep.subr.mxu0 0.0
    %853 = vmatpush2.msra.mxu0 %v227
    %854 = vmatprep.subr.mxu0 0.0
    %855 = vmatpush2.msra.mxu0 %v226
    %856 = vmatprep.subr.mxu0 0.0
    %857 = vmatpush2.msra.mxu0 %v225
    %858 = vmatprep.subr.mxu0 0.0
    %859 = vmatpush2.msra.mxu0 %v224
    %860 = vmatprep.subr.mxu0 0.0
    %861 = vmatpush2.msra.mxu0 %v223
    %862 = vmatprep.subr.mxu0 0.0
    %863 = vmatpush2.msra.mxu0 %v222
    %864 = vmatprep.subr.mxu0 0.0
    %865 = vmatpush2.msra.mxu0 %v221
    %866 = vmatprep.subr.mxu0 0.0
    %867 = vmatpush2.msra.mxu0 %v220
    %868 = vmatprep.subr.mxu0 0.0
    %869 = vmatpush2.msra.mxu0 %v219
    %870 = vmatprep.subr.mxu0 0.0
    %871 = vmatpush2.msra.mxu0 %v218
    %872 = vmatprep.subr.mxu0 0.0
    %873 = vmatpush2.msra.mxu0 %v217
    %874 = vmatprep.mubr.f32.mxu0 %v491
    %875 = vmatmul.mubr.f32.gmra.mxu0 %v490
    %v876 = vpop.f32.mrf.mxu0
    %v877 = vadd.f32 %v807, %v876
    %v878 = vpop.f32.mrf.mxu0
    %879 = vdwg.mxu0
    %880 = vmatprep.subr.mxu0 0.0
    %881 = vmatpush1.msra.mxu0 %v248
    %882 = vmatprep.subr.mxu0 0.0
    %883 = vmatpush1.msra.mxu0 %v247
    %884 = vmatprep.subr.mxu0 0.0
    %885 = vmatpush1.msra.mxu0 %v246
    %886 = vmatprep.subr.mxu0 0.0
    %887 = vmatpush1.msra.mxu0 %v245
    %888 = vmatprep.subr.mxu0 0.0
    %889 = vmatpush1.msra.mxu0 %v244
    %890 = vmatprep.subr.mxu0 0.0
    %891 = vmatpush1.msra.mxu0 %v243
    %892 = vmatprep.subr.mxu0 0.0
    %893 = vmatpush1.msra.mxu0 %v242
    %894 = vmatprep.subr.mxu0 0.0
    %895 = vmatpush1.msra.mxu0 %v241
    %896 = vmatprep.subr.mxu0 0.0
    %897 = vmatpush1.msra.mxu0 %v240
    %898 = vmatprep.subr.mxu0 0.0
    %899 = vmatpush1.msra.mxu0 %v239
    %900 = vmatprep.subr.mxu0 0.0
    %901 = vmatpush1.msra.mxu0 %v238
    %902 = vmatprep.subr.mxu0 0.0
    %903 = vmatpush1.msra.mxu0 %v237
    %904 = vmatprep.subr.mxu0 0.0
    %905 = vmatpush1.msra.mxu0 %v236
    %906 = vmatprep.subr.mxu0 0.0
    %907 = vmatpush1.msra.mxu0 %v235
    %908 = vmatprep.subr.mxu0 0.0
    %909 = vmatpush1.msra.mxu0 %v234
    %910 = vmatprep.subr.mxu0 0.0
    %911 = vmatpush1.msra.mxu0 %v233
    %912 = vmatprep.subr.mxu0 0.0
    %913 = vmatpush2.msra.mxu0 %v264
    %914 = vmatprep.subr.mxu0 0.0
    %915 = vmatpush2.msra.mxu0 %v263
    %916 = vmatprep.subr.mxu0 0.0
    %917 = vmatpush2.msra.mxu0 %v262
    %918 = vmatprep.subr.mxu0 0.0
    %919 = vmatpush2.msra.mxu0 %v261
    %920 = vmatprep.subr.mxu0 0.0
    %921 = vmatpush2.msra.mxu0 %v260
    %922 = vmatprep.subr.mxu0 0.0
    %923 = vmatpush2.msra.mxu0 %v259
    %924 = vmatprep.subr.mxu0 0.0
    %925 = vmatpush2.msra.mxu0 %v258
    %926 = vmatprep.subr.mxu0 0.0
    %927 = vmatpush2.msra.mxu0 %v257
    %928 = vmatprep.subr.mxu0 0.0
    %929 = vmatpush2.msra.mxu0 %v256
    %930 = vmatprep.subr.mxu0 0.0
    %931 = vmatpush2.msra.mxu0 %v255
    %932 = vmatprep.subr.mxu0 0.0
    %933 = vmatpush2.msra.mxu0 %v254
    %934 = vmatprep.subr.mxu0 0.0
    %935 = vmatpush2.msra.mxu0 %v253
    %936 = vmatprep.subr.mxu0 0.0
    %937 = vmatpush2.msra.mxu0 %v252
    %938 = vmatprep.subr.mxu0 0.0
    %939 = vmatpush2.msra.mxu0 %v251
    %940 = vmatprep.subr.mxu0 0.0
    %941 = vmatpush2.msra.mxu0 %v250
    %942 = vmatprep.subr.mxu0 0.0
    %943 = vmatpush2.msra.mxu0 %v249
    %944 = vmatprep.mubr.f32.mxu0 %v525
    %945 = vmatmul.mubr.f32.gmra.mxu0 %v524
    %v946 = vpop.f32.mrf.mxu0
    %v947 = vadd.f32 %v877, %v946
    %v948 = vpop.f32.mrf.mxu0
    %949 = vdwg.mxu0
    %950 = vmatprep.subr.mxu0 0.0
    %951 = vmatpush1.msra.mxu0 %v280
    %952 = vmatprep.subr.mxu0 0.0
    %953 = vmatpush1.msra.mxu0 %v279
    %954 = vmatprep.subr.mxu0 0.0
    %955 = vmatpush1.msra.mxu0 %v278
    %956 = vmatprep.subr.mxu0 0.0
    %957 = vmatpush1.msra.mxu0 %v277
    %958 = vmatprep.subr.mxu0 0.0
    %959 = vmatpush1.msra.mxu0 %v276
    %960 = vmatprep.subr.mxu0 0.0
    %961 = vmatpush1.msra.mxu0 %v275
    %962 = vmatprep.subr.mxu0 0.0
    %963 = vmatpush1.msra.mxu0 %v274
    %964 = vmatprep.subr.mxu0 0.0
    %965 = vmatpush1.msra.mxu0 %v273
    %966 = vmatprep.subr.mxu0 0.0
    %967 = vmatpush1.msra.mxu0 %v272
    %968 = vmatprep.subr.mxu0 0.0
    %969 = vmatpush1.msra.mxu0 %v271
    %970 = vmatprep.subr.mxu0 0.0
    %971 = vmatpush1.msra.mxu0 %v270
    %972 = vmatprep.subr.mxu0 0.0
    %973 = vmatpush1.msra.mxu0 %v269
    %974 = vmatprep.subr.mxu0 0.0
    %975 = vmatpush1.msra.mxu0 %v268
    %976 = vmatprep.subr.mxu0 0.0
    %977 = vmatpush1.msra.mxu0 %v267
    %978 = vmatprep.subr.mxu0 0.0
    %979 = vmatpush1.msra.mxu0 %v266
    %980 = vmatprep.subr.mxu0 0.0
    %981 = vmatpush1.msra.mxu0 %v265
    %982 = vmatprep.subr.mxu0 0.0
    %983 = vmatpush2.msra.mxu0 %v296
    %984 = vmatprep.subr.mxu0 0.0
    %985 = vmatpush2.msra.mxu0 %v295
    %986 = vmatprep.subr.mxu0 0.0
    %987 = vmatpush2.msra.mxu0 %v294
    %988 = vmatprep.subr.mxu0 0.0
    %989 = vmatpush2.msra.mxu0 %v293
    %990 = vmatprep.subr.mxu0 0.0
    %991 = vmatpush2.msra.mxu0 %v292
    %992 = vmatprep.subr.mxu0 0.0
    %993 = vmatpush2.msra.mxu0 %v291
    %994 = vmatprep.subr.mxu0 0.0
    %995 = vmatpush2.msra.mxu0 %v290
    %996 = vmatprep.subr.mxu0 0.0
    %997 = vmatpush2.msra.mxu0 %v289
    %998 = vmatprep.subr.mxu0 0.0
    %999 = vmatpush2.msra.mxu0 %v288
    %1000 = vmatprep.subr.mxu0 0.0
    %1001 = vmatpush2.msra.mxu0 %v287
    %1002 = vmatprep.subr.mxu0 0.0
    %1003 = vmatpush2.msra.mxu0 %v286
    %1004 = vmatprep.subr.mxu0 0.0
    %1005 = vmatpush2.msra.mxu0 %v285
    %1006 = vmatprep.subr.mxu0 0.0
    %1007 = vmatpush2.msra.mxu0 %v284
    %1008 = vmatprep.subr.mxu0 0.0
    %1009 = vmatpush2.msra.mxu0 %v283
    %1010 = vmatprep.subr.mxu0 0.0
    %1011 = vmatpush2.msra.mxu0 %v282
    %1012 = vmatprep.subr.mxu0 0.0
    %1013 = vmatpush2.msra.mxu0 %v281
    %1014 = vmatprep.mubr.f32.mxu0 %v527
    %1015 = vmatmul.mubr.f32.gmra.mxu0 %v526
    %v1016 = vpop.f32.mrf.mxu0
    %v1017 = vadd.f32 %v947, %v1016
    %v1018 = vpop.f32.mrf.mxu0
    %1019 = vdwg.mxu0
    %1020 = vmatprep.subr.mxu0 0.0
    %1021 = vmatpush1.msra.mxu0 %v312
    %1022 = vmatprep.subr.mxu0 0.0
    %1023 = vmatpush1.msra.mxu0 %v311
    %1024 = vmatprep.subr.mxu0 0.0
    %1025 = vmatpush1.msra.mxu0 %v310
    %1026 = vmatprep.subr.mxu0 0.0
    %1027 = vmatpush1.msra.mxu0 %v309
    %1028 = vmatprep.subr.mxu0 0.0
    %1029 = vmatpush1.msra.mxu0 %v308
    %1030 = vmatprep.subr.mxu0 0.0
    %1031 = vmatpush1.msra.mxu0 %v307
    %1032 = vmatprep.subr.mxu0 0.0
    %1033 = vmatpush1.msra.mxu0 %v306
    %1034 = vmatprep.subr.mxu0 0.0
    %1035 = vmatpush1.msra.mxu0 %v305
    %1036 = vmatprep.subr.mxu0 0.0
    %1037 = vmatpush1.msra.mxu0 %v304
    %1038 = vmatprep.subr.mxu0 0.0
    %1039 = vmatpush1.msra.mxu0 %v303
    %1040 = vmatprep.subr.mxu0 0.0
    %1041 = vmatpush1.msra.mxu0 %v302
    %1042 = vmatprep.subr.mxu0 0.0
    %1043 = vmatpush1.msra.mxu0 %v301
    %1044 = vmatprep.subr.mxu0 0.0
    %1045 = vmatpush1.msra.mxu0 %v300
    %1046 = vmatprep.subr.mxu0 0.0
    %1047 = vmatpush1.msra.mxu0 %v299
    %1048 = vmatprep.subr.mxu0 0.0
    %1049 = vmatpush1.msra.mxu0 %v298
    %1050 = vmatprep.subr.mxu0 0.0
    %1051 = vmatpush1.msra.mxu0 %v297
    %1052 = vmatprep.subr.mxu0 0.0
    %1053 = vmatpush2.msra.mxu0 %v328
    %1054 = vmatprep.subr.mxu0 0.0
    %1055 = vmatpush2.msra.mxu0 %v327
    %1056 = vmatprep.subr.mxu0 0.0
    %1057 = vmatpush2.msra.mxu0 %v326
    %1058 = vmatprep.subr.mxu0 0.0
    %1059 = vmatpush2.msra.mxu0 %v325
    %1060 = vmatprep.subr.mxu0 0.0
    %1061 = vmatpush2.msra.mxu0 %v324
    %1062 = vmatprep.subr.mxu0 0.0
    %1063 = vmatpush2.msra.mxu0 %v323
    %1064 = vmatprep.subr.mxu0 0.0
    %1065 = vmatpush2.msra.mxu0 %v322
    %1066 = vmatprep.subr.mxu0 0.0
    %1067 = vmatpush2.msra.mxu0 %v321
    %1068 = vmatprep.subr.mxu0 0.0
    %1069 = vmatpush2.msra.mxu0 %v320
    %1070 = vmatprep.subr.mxu0 0.0
    %1071 = vmatpush2.msra.mxu0 %v319
    %1072 = vmatprep.subr.mxu0 0.0
    %1073 = vmatpush2.msra.mxu0 %v318
    %1074 = vmatprep.subr.mxu0 0.0
    %1075 = vmatpush2.msra.mxu0 %v317
    %1076 = vmatprep.subr.mxu0 0.0
    %1077 = vmatpush2.msra.mxu0 %v316
    %1078 = vmatprep.subr.mxu0 0.0
    %1079 = vmatpush2.msra.mxu0 %v315
    %1080 = vmatprep.subr.mxu0 0.0
    %1081 = vmatpush2.msra.mxu0 %v314
    %1082 = vmatprep.subr.mxu0 0.0
    %1083 = vmatpush2.msra.mxu0 %v313
    %1084 = vmatprep.mubr.f32.mxu0 %v561
    %1085 = vmatmul.mubr.f32.gmra.mxu0 %v560
    %v1086 = vpop.f32.mrf.mxu0
    %v1087 = vadd.f32 %v1017, %v1086
    %v1088 = vpop.f32.mrf.mxu0
    %1089 = vdwg.mxu0
    %1090 = vmatprep.subr.mxu0 0.0
    %1091 = vmatpush1.msra.mxu0 %v344
    %1092 = vmatprep.subr.mxu0 0.0
    %1093 = vmatpush1.msra.mxu0 %v343
    %1094 = vmatprep.subr.mxu0 0.0
    %1095 = vmatpush1.msra.mxu0 %v342
    %1096 = vmatprep.subr.mxu0 0.0
    %1097 = vmatpush1.msra.mxu0 %v341
    %1098 = vmatprep.subr.mxu0 0.0
    %1099 = vmatpush1.msra.mxu0 %v340
    %1100 = vmatprep.subr.mxu0 0.0
    %1101 = vmatpush1.msra.mxu0 %v339
    %1102 = vmatprep.subr.mxu0 0.0
    %1103 = vmatpush1.msra.mxu0 %v338
    %1104 = vmatprep.subr.mxu0 0.0
    %1105 = vmatpush1.msra.mxu0 %v337
    %1106 = vmatprep.subr.mxu0 0.0
    %1107 = vmatpush1.msra.mxu0 %v336
    %1108 = vmatprep.subr.mxu0 0.0
    %1109 = vmatpush1.msra.mxu0 %v335
    %1110 = vmatprep.subr.mxu0 0.0
    %1111 = vmatpush1.msra.mxu0 %v334
    %1112 = vmatprep.subr.mxu0 0.0
    %1113 = vmatpush1.msra.mxu0 %v333
    %1114 = vmatprep.subr.mxu0 0.0
    %1115 = vmatpush1.msra.mxu0 %v332
    %1116 = vmatprep.subr.mxu0 0.0
    %1117 = vmatpush1.msra.mxu0 %v331
    %1118 = vmatprep.subr.mxu0 0.0
    %1119 = vmatpush1.msra.mxu0 %v330
    %1120 = vmatprep.subr.mxu0 0.0
    %1121 = vmatpush1.msra.mxu0 %v329
    %1122 = vmatprep.subr.mxu0 0.0
    %1123 = vmatpush2.msra.mxu0 %v360
    %1124 = vmatprep.subr.mxu0 0.0
    %1125 = vmatpush2.msra.mxu0 %v359
    %1126 = vmatprep.subr.mxu0 0.0
    %1127 = vmatpush2.msra.mxu0 %v358
    %1128 = vmatprep.subr.mxu0 0.0
    %1129 = vmatpush2.msra.mxu0 %v357
    %1130 = vmatprep.subr.mxu0 0.0
    %1131 = vmatpush2.msra.mxu0 %v356
    %1132 = vmatprep.subr.mxu0 0.0
    %1133 = vmatpush2.msra.mxu0 %v355
    %1134 = vmatprep.subr.mxu0 0.0
    %1135 = vmatpush2.msra.mxu0 %v354
    %1136 = vmatprep.subr.mxu0 0.0
    %1137 = vmatpush2.msra.mxu0 %v353
    %1138 = vmatprep.subr.mxu0 0.0
    %1139 = vmatpush2.msra.mxu0 %v352
    %1140 = vmatprep.subr.mxu0 0.0
    %1141 = vmatpush2.msra.mxu0 %v351
    %1142 = vmatprep.subr.mxu0 0.0
    %1143 = vmatpush2.msra.mxu0 %v350
    %1144 = vmatprep.subr.mxu0 0.0
    %1145 = vmatpush2.msra.mxu0 %v349
    %1146 = vmatprep.subr.mxu0 0.0
    %1147 = vmatpush2.msra.mxu0 %v348
    %1148 = vmatprep.subr.mxu0 0.0
    %1149 = vmatpush2.msra.mxu0 %v347
    %1150 = vmatprep.subr.mxu0 0.0
    %1151 = vmatpush2.msra.mxu0 %v346
    %1152 = vmatprep.subr.mxu0 0.0
    %1153 = vmatpush2.msra.mxu0 %v345
    %1154 = vmatprep.mubr.f32.mxu0 %v563
    %1155 = vmatmul.mubr.f32.gmra.mxu0 %v562
    %v1156 = vpop.f32.mrf.mxu0
    %v1157 = vadd.f32 %v1087, %v1156
    %v1158 = vpop.f32.mrf.mxu0
    %1159 = vdwg.mxu0
    %1160 = vmatprep.subr.mxu0 0.0
    %1161 = vmatpush1.msra.mxu0 %v376
    %1162 = vmatprep.subr.mxu0 0.0
    %1163 = vmatpush1.msra.mxu0 %v375
    %1164 = vmatprep.subr.mxu0 0.0
    %1165 = vmatpush1.msra.mxu0 %v374
    %1166 = vmatprep.subr.mxu0 0.0
    %1167 = vmatpush1.msra.mxu0 %v373
    %1168 = vmatprep.subr.mxu0 0.0
    %1169 = vmatpush1.msra.mxu0 %v372
    %1170 = vmatprep.subr.mxu0 0.0
    %1171 = vmatpush1.msra.mxu0 %v371
    %1172 = vmatprep.subr.mxu0 0.0
    %1173 = vmatpush1.msra.mxu0 %v370
    %1174 = vmatprep.subr.mxu0 0.0
    %1175 = vmatpush1.msra.mxu0 %v369
    %1176 = vmatprep.subr.mxu0 0.0
    %1177 = vmatpush1.msra.mxu0 %v368
    %1178 = vmatprep.subr.mxu0 0.0
    %1179 = vmatpush1.msra.mxu0 %v367
    %1180 = vmatprep.subr.mxu0 0.0
    %1181 = vmatpush1.msra.mxu0 %v366
    %1182 = vmatprep.subr.mxu0 0.0
    %1183 = vmatpush1.msra.mxu0 %v365
    %1184 = vmatprep.subr.mxu0 0.0
    %1185 = vmatpush1.msra.mxu0 %v364
    %1186 = vmatprep.subr.mxu0 0.0
    %1187 = vmatpush1.msra.mxu0 %v363
    %1188 = vmatprep.subr.mxu0 0.0
    %1189 = vmatpush1.msra.mxu0 %v362
    %1190 = vmatprep.subr.mxu0 0.0
    %1191 = vmatpush1.msra.mxu0 %v361
    %1192 = vmatprep.subr.mxu0 0.0
    %1193 = vmatpush2.msra.mxu0 %v392
    %1194 = vmatprep.subr.mxu0 0.0
    %1195 = vmatpush2.msra.mxu0 %v391
    %1196 = vmatprep.subr.mxu0 0.0
    %1197 = vmatpush2.msra.mxu0 %v390
    %1198 = vmatprep.subr.mxu0 0.0
    %1199 = vmatpush2.msra.mxu0 %v389
    %1200 = vmatprep.subr.mxu0 0.0
    %1201 = vmatpush2.msra.mxu0 %v388
    %1202 = vmatprep.subr.mxu0 0.0
    %1203 = vmatpush2.msra.mxu0 %v387
    %1204 = vmatprep.subr.mxu0 0.0
    %1205 = vmatpush2.msra.mxu0 %v386
    %1206 = vmatprep.subr.mxu0 0.0
    %1207 = vmatpush2.msra.mxu0 %v385
    %1208 = vmatprep.subr.mxu0 0.0
    %1209 = vmatpush2.msra.mxu0 %v384
    %1210 = vmatprep.subr.mxu0 0.0
    %1211 = vmatpush2.msra.mxu0 %v383
    %1212 = vmatprep.subr.mxu0 0.0
    %1213 = vmatpush2.msra.mxu0 %v382
    %1214 = vmatprep.subr.mxu0 0.0
    %1215 = vmatpush2.msra.mxu0 %v381
    %1216 = vmatprep.subr.mxu0 0.0
    %1217 = vmatpush2.msra.mxu0 %v380
    %1218 = vmatprep.subr.mxu0 0.0
    %1219 = vmatpush2.msra.mxu0 %v379
    %1220 = vmatprep.subr.mxu0 0.0
    %1221 = vmatpush2.msra.mxu0 %v378
    %1222 = vmatprep.subr.mxu0 0.0
    %1223 = vmatpush2.msra.mxu0 %v377
    %1224 = vmatprep.mubr.f32.mxu0 %v581
    %1225 = vmatmul.mubr.f32.gmra.mxu0 %v580
    %v1226 = vpop.f32.mrf.mxu0
    %v1227 = vadd.f32 %v1157, %v1226
    %v1228 = vpop.f32.mrf.mxu0
    %1229 = vdwg.mxu0
    %v1230 = vmax.f32 %v1227, 0.0
    %v1231 = vld [vmem:[#allocation8] sm:$0xff]
    %v1232 = vld [vmem:[#allocation8 + $0x8] sm:$0xff]
    %v1233 = vld [vmem:[#allocation8 + $0x10] sm:$0xff]
    %v1234 = vld [vmem:[#allocation8 + $0x18] sm:$0xff]
    %v1235 = vld [vmem:[#allocation8 + $0x20] sm:$0xff]
    %v1236 = vld [vmem:[#allocation8 + $0x28] sm:$0xff]
    %v1237 = vld [vmem:[#allocation8 + $0x30] sm:$0xff]
    %v1238 = vld [vmem:[#allocation8 + $0x38] sm:$0xff]
    %v1239 = vld [vmem:[#allocation8 + $0x40] sm:$0xff]
    %v1240 = vld [vmem:[#allocation8 + $0x48] sm:$0xff]
    %v1241 = vld [vmem:[#allocation8 + $0x50] sm:$0xff]
    %v1242 = vld [vmem:[#allocation8 + $0x58] sm:$0xff]
    %v1243 = vld [vmem:[#allocation8 + $0x60] sm:$0xff]
    %v1244 = vld [vmem:[#allocation8 + $0x68] sm:$0xff]
    %v1245 = vld [vmem:[#allocation8 + $0x70] sm:$0xff]
    %v1246 = vld [vmem:[#allocation8 + $0x78] sm:$0xff]
    %v1247 = vld [vmem:[#allocation10] sm:$0x1]
    %v1249 = vlaneseq
    %v1250 = vshrl.u32 %v1249, 7
    %v1251 = vsub.s32 0, %v1250
    %v1252 = vrot.slane %v1247, %v1251
    %1254 = vmatprep.subr.mxu0 0.0
    %1255 = vmatpush1.msra.mxu0 %v1246
    %1256 = vmatprep.subr.mxu0 0.0
    %1257 = vmatpush1.msra.mxu0 %v1245
    %1258 = vmatprep.subr.mxu0 0.0
    %1259 = vmatpush1.msra.mxu0 %v1244
    %1260 = vmatprep.subr.mxu0 0.0
    %1261 = vmatpush1.msra.mxu0 %v1243
    %1262 = vmatprep.subr.mxu0 0.0
    %1263 = vmatpush1.msra.mxu0 %v1242
    %1264 = vmatprep.subr.mxu0 0.0
    %1265 = vmatpush1.msra.mxu0 %v1241
    %1266 = vmatprep.subr.mxu0 0.0
    %1267 = vmatpush1.msra.mxu0 %v1240
    %1268 = vmatprep.subr.mxu0 0.0
    %1269 = vmatpush1.msra.mxu0 %v1239
    %1270 = vmatprep.subr.mxu0 0.0
    %1271 = vmatpush1.msra.mxu0 %v1238
    %1272 = vmatprep.subr.mxu0 0.0
    %1273 = vmatpush1.msra.mxu0 %v1237
    %1274 = vmatprep.subr.mxu0 0.0
    %1275 = vmatpush1.msra.mxu0 %v1236
    %1276 = vmatprep.subr.mxu0 0.0
    %1277 = vmatpush1.msra.mxu0 %v1235
    %1278 = vmatprep.subr.mxu0 0.0
    %1279 = vmatpush1.msra.mxu0 %v1234
    %1280 = vmatprep.subr.mxu0 0.0
    %1281 = vmatpush1.msra.mxu0 %v1233
    %1282 = vmatprep.subr.mxu0 0.0
    %1283 = vmatpush1.msra.mxu0 %v1232
    %1284 = vmatprep.subr.mxu0 0.0
    %1285 = vmatpush1.msra.mxu0 %v1231
    %1286 = vmatprep.subr.mxu0 0.0
    %1287 = vmatpush2.msra.mxu0 0.0
    %1288 = vmatprep.subr.mxu0 0.0
    %1289 = vmatpush2.msra.mxu0 0.0
    %1290 = vmatprep.subr.mxu0 0.0
    %1291 = vmatpush2.msra.mxu0 0.0
    %1292 = vmatprep.subr.mxu0 0.0
    %1293 = vmatpush2.msra.mxu0 0.0
    %1294 = vmatprep.subr.mxu0 0.0
    %1295 = vmatpush2.msra.mxu0 0.0
    %1296 = vmatprep.subr.mxu0 0.0
    %1297 = vmatpush2.msra.mxu0 0.0
    %1298 = vmatprep.subr.mxu0 0.0
    %1299 = vmatpush2.msra.mxu0 0.0
    %1300 = vmatprep.subr.mxu0 0.0
    %1301 = vmatpush2.msra.mxu0 0.0
    %1302 = vmatprep.subr.mxu0 0.0
    %1303 = vmatpush2.msra.mxu0 0.0
    %1304 = vmatprep.subr.mxu0 0.0
    %1305 = vmatpush2.msra.mxu0 0.0
    %1306 = vmatprep.subr.mxu0 0.0
    %1307 = vmatpush2.msra.mxu0 0.0
    %1308 = vmatprep.subr.mxu0 0.0
    %1309 = vmatpush2.msra.mxu0 0.0
    %1310 = vmatprep.subr.mxu0 0.0
    %1311 = vmatpush2.msra.mxu0 0.0
    %1312 = vmatprep.subr.mxu0 0.0
    %1313 = vmatpush2.msra.mxu0 0.0
    %1314 = vmatprep.subr.mxu0 0.0
    %1315 = vmatpush2.msra.mxu0 0.0
    %1316 = vmatprep.subr.mxu0 0.0
    %1317 = vmatpush2.msra.mxu0 0.0
    %1318 = vmatprep.mubr.f32.mxu0 0.0
    %1319 = vmatmul.mubr.f32.gmra.mxu0 %v1230
    %v1320 = vpop.f32.mrf.mxu0
    %v1321 = vadd.f32 %v1252, %v1320
    %v1322 = vpop.f32.mrf.mxu0
    %1323 = vdwg.mxu0
    %1324 = vst [vmem:[#allocation11] sm:$0xff] %v1321
    // Predicated region
    $region42: #{_forward_impl.1} parent=1 // pred_check
      _
    $region43: #{_forward_impl.1} parent=1 // pred_check_branch
      %1326 = sbr.rel (0) target = $region45
    $region44: #{_forward_impl.1} parent=1 // pred_region
      %s1328 = ssub.s32 128, 32
      %1329 = vsyncadd [#allocation4], %s1328
      %s1330 = sshll.u32 [#allocation11], 4
      %s1331 = int_to_ptr.vmem [resolvable:$true] %s1330
      %1336 = dma.vmem_to_hbm [thread:$0]  %s1331, 32, %s5, [#allocation4], 32, 32, 2
    $region45: #{_forward_impl.1} parent=1 // pred_fallthru
      _
    // Predicated region
    $region46: #{_forward_impl.1} parent=1 // pred_check
      _
    $region47: #{_forward_impl.1} parent=1 // pred_check_branch
      %1338 = sbr.rel (0) target = $region49
    $region48: #{_forward_impl.1} parent=1 // pred_region
      %1339 = dma.done [#allocation4], 128
    $region49: #{_forward_impl.1} parent=1 // pred_fallthru
      _
    %1340 = vsyncpa [#allocation3], 1
    %1341 = vsyncpa [#allocation6], 1
    %1342 = vsyncpa [#allocation9], 1
    %1343 = vsyncpa [#allocation4], 1

// kernel: _forward_impl.1
$region0: #{_forward_impl.1}
  #allocation0 [shape = 'u32[]', space=smem, size = 0x4, offset = 0x4, fixed_abs, tag = 'smem constant byte address 0x4 - core index']
  #allocation1 [shape = 'u32[144,128]{1,0:T(1,128)}', space=vmem, size = 0x12000, scoped, tag = 'internal scratch']
  %s0 = inlined_call_operand.hbm [shape: f32[2,2304], index: 0, kind: input, shape index: {}]
  %s1 = inlined_call_operand.hbm [shape: f32[2304,128], index: 1, kind: input, shape index: {}]
  %s2 = inlined_call_operand.hbm [shape: f32[1,128], index: 2, kind: input, shape index: {}]
  %s3 = inlined_call_operand.hbm [shape: f32[128,128], index: 3, kind: input, shape index: {}]
  %s4 = inlined_call_operand.hbm [shape: f32[1,128], index: 4, kind: input, shape index: {}]
  %s5 = inlined_call_operand.hbm [shape: f32[2,128], index: 5, kind: output, shape index: {}]
  %s6 = sld [smem:[#allocation0]]
  $region50: #{_forward_impl.1} parent=0
    _
  %s8 = ssub.s32 1, %s6
  %s9 = scalar_select 0, %s8, %s6
  $region1: #{_forward_impl.1} parent=0
    #allocation2 [shape = 'u8[73728]{0}', space=vmem, size = 0x12000, scoped, tag = 'input window, operand 0, single buffered']
    #allocation3 [shape = 's32[1]{0}', space=sflag, size = 0x4, scoped, tag = 'scoped memory for _forward_impl.1']
    #allocation4 [shape = 's32[1]{0}', space=sflag, size = 0x4, scoped, tag = 'scoped memory for _forward_impl.1']
    #allocation5 [shape = 'u8[1179648]{0}', space=vmem, size = 0x120000, scoped, tag = 'input window, operand 1, single buffered']
    #allocation6 [shape = 's32[1]{0}', space=sflag, size = 0x4, scoped, tag = 'scoped memory for _forward_impl.1']
    #allocation7 [shape = 'u8[512]{0}', space=vmem, size = 0x400, scoped, tag = 'input window, operand 2, single buffered']
    #allocation8 [shape = 'u8[65536]{0}', space=vmem, size = 0x10000, scoped, tag = 'input window, operand 3, single buffered']
    #allocation9 [shape = 's32[1]{0}', space=sflag, size = 0x4, scoped, tag = 'scoped memory for _forward_impl.1']
    #allocation10 [shape = 'u8[512]{0}', space=vmem, size = 0x400, scoped, tag = 'input window, operand 4, single buffered']
    #allocation11 [shape = 'u8[4096]{0}', space=vmem, size = 0x1000, scoped, tag = 'output window, operand 0, single buffered']
    %10 = vsyncpa [#allocation3], 0
    %11 = vsyncpa [#allocation6], 0
    %12 = vsyncpa [#allocation9], 0
    %13 = vsyncpa [#allocation4], 0
    // Predicated region
    $region2: #{_forward_impl.1} parent=1 // pred_check
      _
    $region3: #{_forward_impl.1} parent=1 // pred_check_branch
      %15 = sbr.rel (0) target = $region5
    $region4: #{_forward_impl.1} parent=1 // pred_region
      %s17 = ssub.s32 2304, 576
      %18 = vsyncadd [#allocation3], %s17
      %s19 = sshll.u32 [#allocation2], 4
      %s20 = int_to_ptr.vmem [resolvable:$true] %s19
      %25 = dma.hbm_to_vmem [thread:$0]  %s0, 576, %s20, [#allocation3], 576, 576, 36
    $region5: #{_forward_impl.1} parent=1 // pred_fallthru
      _
    // Predicated region
    $region6: #{_forward_impl.1} parent=1 // pred_check
      _
    $region7: #{_forward_impl.1} parent=1 // pred_check_branch
      %27 = sbr.rel (0) target = $region9
    $region8: #{_forward_impl.1} parent=1 // pred_region
      %s29 = ssub.s32 36864, 36864
      %30 = vsyncadd [#allocation6], %s29
      %s31 = sshll.u32 [#allocation5], 4
      %s32 = int_to_ptr.vmem [resolvable:$true] %s31
      %37 = dma.hbm_to_vmem [thread:$0]  %s1, 36864, %s32, [#allocation6], 128, 128, 8
    $region9: #{_forward_impl.1} parent=1 // pred_fallthru
      _
    // Predicated region
    $region10: #{_forward_impl.1} parent=1 // pred_check
      _
    $region11: #{_forward_impl.1} parent=1 // pred_check_branch
      %39 = sbr.rel (0) target = $region13
    $region12: #{_forward_impl.1} parent=1 // pred_region
      %s41 = ssub.s32 16, 16
      %42 = vsyncadd [#allocation6], %s41
      %s44 = sshll.u32 [#allocation7], 4
      %s45 = int_to_ptr.vmem [resolvable:$true] %s44
      %47 = dma.hbm_to_vmem [thread:$0]  %s2, 16, %s45, [#allocation6]
    $region13: #{_forward_impl.1} parent=1 // pred_fallthru
      _
    // Predicated region
    $region14: #{_forward_impl.1} parent=1 // pred_check
      _
    $region15: #{_forward_impl.1} parent=1 // pred_check_branch
      %49 = sbr.rel (0) target = $region17
    $region16: #{_forward_impl.1} parent=1 // pred_region
      %s51 = ssub.s32 2048, 2048
      %52 = vsyncadd [#allocation9], %s51
      %s53 = sshll.u32 [#allocation8], 4
      %s54 = int_to_ptr.vmem [resolvable:$true] %s53
      %59 = dma.hbm_to_vmem [thread:$0]  %s3, 2048, %s54, [#allocation9], 128, 128, 8
    $region17: #{_forward_impl.1} parent=1 // pred_fallthru
      _
    // Predicated region
    $region18: #{_forward_impl.1} parent=1 // pred_check
      _
    $region19: #{_forward_impl.1} parent=1 // pred_check_branch
      %61 = sbr.rel (0) target = $region21
    $region20: #{_forward_impl.1} parent=1 // pred_region
      %s63 = ssub.s32 16, 16
      %64 = vsyncadd [#allocation9], %s63
      %s66 = sshll.u32 [#allocation10], 4
      %s67 = int_to_ptr.vmem [resolvable:$true] %s66
      %69 = dma.hbm_to_vmem [thread:$0]  %s4, 16, %s67, [#allocation9]
    $region21: #{_forward_impl.1} parent=1 // pred_fallthru
      _
    // Predicated region
    $region22: #{_forward_impl.1} parent=1 // pred_check
      _
    $region23: #{_forward_impl.1} parent=1 // pred_check_branch
      %71 = sbr.rel (0) target = $region25
    $region24: #{_forward_impl.1} parent=1 // pred_region
      %72 = dma.done [#allocation3], 2304
    $region25: #{_forward_impl.1} parent=1 // pred_fallthru
      _
    // Predicated region
    $region26: #{_forward_impl.1} parent=1 // pred_check
      _
    $region27: #{_forward_impl.1} parent=1 // pred_check_branch
      %74 = sbr.rel (0) target = $region29
    $region28: #{_forward_impl.1} parent=1 // pred_region
      %75 = dma.done [#allocation6], 36864
    $region29: #{_forward_impl.1} parent=1 // pred_fallthru
      _
    // Predicated region
    $region30: #{_forward_impl.1} parent=1 // pred_check
      _
    $region31: #{_forward_impl.1} parent=1 // pred_check_branch
      %77 = sbr.rel (0) target = $region33
    $region32: #{_forward_impl.1} parent=1 // pred_region
      %78 = dma.done [#allocation6], 16
    $region33: #{_forward_impl.1} parent=1 // pred_fallthru
      _
    // Predicated region
    $region34: #{_forward_impl.1} parent=1 // pred_check
      _
    $region35: #{_forward_impl.1} parent=1 // pred_check_branch
      %80 = sbr.rel (0) target = $region37
    $region36: #{_forward_impl.1} parent=1 // pred_region
      %81 = dma.done [#allocation9], 2048
    $region37: #{_forward_impl.1} parent=1 // pred_fallthru
      _
    // Predicated region
    $region38: #{_forward_impl.1} parent=1 // pred_check
      _
    $region39: #{_forward_impl.1} parent=1 // pred_check_branch
      %83 = sbr.rel (0) target = $region41
    $region40: #{_forward_impl.1} parent=1 // pred_region
      %84 = dma.done [#allocation9], 16
    $region41: #{_forward_impl.1} parent=1 // pred_fallthru
      _
    %v85 = vld [vmem:[#allocation2] sm:$0xff]
    %v86 = vld [vmem:[#allocation2 + $0x8] sm:$0xff]
    %v87 = vld [vmem:[#allocation2 + $0x10] sm:$0xff]
    %v88 = vld [vmem:[#allocation2 + $0x18] sm:$0xff]
    %v89 = vld [vmem:[#allocation2 + $0x20] sm:$0xf]
    %v90 = vld [vmem:[#allocation2 + $0x24] sm:$0xff]
    %v91 = vld [vmem:[#allocation2 + $0x2c] sm:$0xff]
    %v92 = vld [vmem:[#allocation2 + $0x34] sm:$0xff]
    %v93 = vld [vmem:[#allocation2 + $0x3c] sm:$0xff]
    %v94 = vld [vmem:[#allocation2 + $0x44] sm:$0xf]
    %v95 = vld [vmem:[#allocation2 + $0x48] sm:$0xff]
    %v96 = vld [vmem:[#allocation2 + $0x50] sm:$0xff]
    %v97 = vld [vmem:[#allocation2 + $0x58] sm:$0xff]
    %v98 = vld [vmem:[#allocation2 + $0x60] sm:$0xff]
    %v99 = vld [vmem:[#allocation2 + $0x68] sm:$0xf]
    %v100 = vld [vmem:[#allocation2 + $0x6c] sm:$0xff]
    %v101 = vld [vmem:[#allocation2 + $0x74] sm:$0xff]
    %v102 = vld [vmem:[#allocation2 + $0x7c] sm:$0xff]
    %v103 = vld [vmem:[#allocation2 + $0x84] sm:$0xff]
    %v104 = vld [vmem:[#allocation2 + $0x8c] sm:$0xf]
    %v105 = vld [vmem:[#allocation5] sm:$0xff]
    %v106 = vld [vmem:[#allocation5 + $0x8] sm:$0xff]
    %v107 = vld [vmem:[#allocation5 + $0x10] sm:$0xff]
    %v108 = vld [vmem:[#allocation5 + $0x18] sm:$0xff]
    %v109 = vld [vmem:[#allocation5 + $0x20] sm:$0xff]
    %v110 = vld [vmem:[#allocation5 + $0x28] sm:$0xff]
    %v111 = vld [vmem:[#allocation5 + $0x30] sm:$0xff]
    %v112 = vld [vmem:[#allocation5 + $0x38] sm:$0xff]
    %v113 = vld [vmem:[#allocation5 + $0x40] sm:$0xff]
    %v114 = vld [vmem:[#allocation5 + $0x48] sm:$0xff]
    %v115 = vld [vmem:[#allocation5 + $0x50] sm:$0xff]
    %v116 = vld [vmem:[#allocation5 + $0x58] sm:$0xff]
    %v117 = vld [vmem:[#allocation5 + $0x60] sm:$0xff]
    %v118 = vld [vmem:[#allocation5 + $0x68] sm:$0xff]
    %v119 = vld [vmem:[#allocation5 + $0x70] sm:$0xff]
    %v120 = vld [vmem:[#allocation5 + $0x78] sm:$0xff]
    %v121 = vld [vmem:[#allocation5 + $0x80] sm:$0xff]
    %v122 = vld [vmem:[#allocation5 + $0x88] sm:$0xff]
    %v123 = vld [vmem:[#allocation5 + $0x90] sm:$0xff]
    %v124 = vld [vmem:[#allocation5 + $0x98] sm:$0xff]
    %v125 = vld [vmem:[#allocation5 + $0xa0] sm:$0xff]
    %v126 = vld [vmem:[#allocation5 + $0xa8] sm:$0xff]
    %v127 = vld [vmem:[#allocation5 + $0xb0] sm:$0xff]
    %v128 = vld [vmem:[#allocation5 + $0xb8] sm:$0xff]
    %v129 = vld [vmem:[#allocation5 + $0xc0] sm:$0xff]
    %v130 = vld [vmem:[#allocation5 + $0xc8] sm:$0xff]
    %v131 = vld [vmem:[#allocation5 + $0xd0] sm:$0xff]
    %v132 = vld [vmem:[#allocation5 + $0xd8] sm:$0xff]
    %v133 = vld [vmem:[#allocation5 + $0xe0] sm:$0xff]
    %v134 = vld [vmem:[#allocation5 + $0xe8] sm:$0xff]
    %v135 = vld [vmem:[#allocation5 + $0xf0] sm:$0xff]
    %v136 = vld [vmem:[#allocation5 + $0xf8] sm:$0xff]
    %v137 = vld [vmem:[#allocation5 + $0x100] sm:$0xff]
    %v138 = vld [vmem:[#allocation5 + $0x108] sm:$0xff]
    %v139 = vld [vmem:[#allocation5 + $0x110] sm:$0xff]
    %v140 = vld [vmem:[#allocation5 + $0x118] sm:$0xff]
    %v141 = vld [vmem:[#allocation5 + $0x120] sm:$0xff]
    %v142 = vld [vmem:[#allocation5 + $0x128] sm:$0xff]
    %v143 = vld [vmem:[#allocation5 + $0x130] sm:$0xff]
    %v144 = vld [vmem:[#allocation5 + $0x138] sm:$0xff]
    %v145 = vld [vmem:[#allocation5 + $0x140] sm:$0xff]
    %v146 = vld [vmem:[#allocation5 + $0x148] sm:$0xff]
    %v147 = vld [vmem:[#allocation5 + $0x150] sm:$0xff]
    %v148 = vld [vmem:[#allocation5 + $0x158] sm:$0xff]
    %v149 = vld [vmem:[#allocation5 + $0x160] sm:$0xff]
    %v150 = vld [vmem:[#allocation5 + $0x168] sm:$0xff]
    %v151 = vld [vmem:[#allocation5 + $0x170] sm:$0xff]
    %v152 = vld [vmem:[#allocation5 + $0x178] sm:$0xff]
    %v153 = vld [vmem:[#allocation5 + $0x180] sm:$0xff]
    %v154 = vld [vmem:[#allocation5 + $0x188] sm:$0xff]
    %v155 = vld [vmem:[#allocation5 + $0x190] sm:$0xff]
    %v156 = vld [vmem:[#allocation5 + $0x198] sm:$0xff]
    %v157 = vld [vmem:[#allocation5 + $0x1a0] sm:$0xff]
    %v158 = vld [vmem:[#allocation5 + $0x1a8] sm:$0xff]
    %v159 = vld [vmem:[#allocation5 + $0x1b0] sm:$0xff]
    %v160 = vld [vmem:[#allocation5 + $0x1b8] sm:$0xff]
    %v161 = vld [vmem:[#allocation5 + $0x1c0] sm:$0xff]
    %v162 = vld [vmem:[#allocation5 + $0x1c8] sm:$0xff]
    %v163 = vld [vmem:[#allocation5 + $0x1d0] sm:$0xff]
    %v164 = vld [vmem:[#allocation5 + $0x1d8] sm:$0xff]
    %v165 = vld [vmem:[#allocation5 + $0x1e0] sm:$0xff]
    %v166 = vld [vmem:[#allocation5 + $0x1e8] sm:$0xff]
    %v167 = vld [vmem:[#allocation5 + $0x1f0] sm:$0xff]
    %v168 = vld [vmem:[#allocation5 + $0x1f8] sm:$0xff]
    %v169 = vld [vmem:[#allocation5 + $0x200] sm:$0xff]
    %v170 = vld [vmem:[#allocation5 + $0x208] sm:$0xff]
    %v171 = vld [vmem:[#allocation5 + $0x210] sm:$0xff]
    %v172 = vld [vmem:[#allocation5 + $0x218] sm:$0xff]
    %v173 = vld [vmem:[#allocation5 + $0x220] sm:$0xff]
    %v174 = vld [vmem:[#allocation5 + $0x228] sm:$0xff]
    %v175 = vld [vmem:[#allocation5 + $0x230] sm:$0xff]
    %v176 = vld [vmem:[#allocation5 + $0x238] sm:$0xff]
    %v177 = vld [vmem:[#allocation5 + $0x240] sm:$0xff]
    %v178 = vld [vmem:[#allocation5 + $0x248] sm:$0xff]
    %v179 = vld [vmem:[#allocation5 + $0x250] sm:$0xff]
    %v180 = vld [vmem:[#allocation5 + $0x258] sm:$0xff]
    %v181 = vld [vmem:[#allocation5 + $0x260] sm:$0xff]
    %v182 = vld [vmem:[#allocation5 + $0x268] sm:$0xff]
    %v183 = vld [vmem:[#allocation5 + $0x270] sm:$0xff]
    %v184 = vld [vmem:[#allocation5 + $0x278] sm:$0xff]
    %v185 = vld [vmem:[#allocation5 + $0x280] sm:$0xff]
    %v186 = vld [vmem:[#allocation5 + $0x288] sm:$0xff]
    %v187 = vld [vmem:[#allocation5 + $0x290] sm:$0xff]
    %v188 = vld [vmem:[#allocation5 + $0x298] sm:$0xff]
    %v189 = vld [vmem:[#allocation5 + $0x2a0] sm:$0xff]
    %v190 = vld [vmem:[#allocation5 + $0x2a8] sm:$0xff]
    %v191 = vld [vmem:[#allocation5 + $0x2b0] sm:$0xff]
    %v192 = vld [vmem:[#allocation5 + $0x2b8] sm:$0xff]
    %v193 = vld [vmem:[#allocation5 + $0x2c0] sm:$0xff]
    %v194 = vld [vmem:[#allocation5 + $0x2c8] sm:$0xff]
    %v195 = vld [vmem:[#allocation5 + $0x2d0] sm:$0xff]
    %v196 = vld [vmem:[#allocation5 + $0x2d8] sm:$0xff]
    %v197 = vld [vmem:[#allocation5 + $0x2e0] sm:$0xff]
    %v198 = vld [vmem:[#allocation5 + $0x2e8] sm:$0xff]
    %v199 = vld [vmem:[#allocation5 + $0x2f0] sm:$0xff]
    %v200 = vld [vmem:[#allocation5 + $0x2f8] sm:$0xff]
    %v201 = vld [vmem:[#allocation5 + $0x300] sm:$0xff]
    %v202 = vld [vmem:[#allocation5 + $0x308] sm:$0xff]
    %v203 = vld [vmem:[#allocation5 + $0x310] sm:$0xff]
    %v204 = vld [vmem:[#allocation5 + $0x318] sm:$0xff]
    %v205 = vld [vmem:[#allocation5 + $0x320] sm:$0xff]
    %v206 = vld [vmem:[#allocation5 + $0x328] sm:$0xff]
    %v207 = vld [vmem:[#allocation5 + $0x330] sm:$0xff]
    %v208 = vld [vmem:[#allocation5 + $0x338] sm:$0xff]
    %v209 = vld [vmem:[#allocation5 + $0x340] sm:$0xff]
    %v210 = vld [vmem:[#allocation5 + $0x348] sm:$0xff]
    %v211 = vld [vmem:[#allocation5 + $0x350] sm:$0xff]
    %v212 = vld [vmem:[#allocation5 + $0x358] sm:$0xff]
    %v213 = vld [vmem:[#allocation5 + $0x360] sm:$0xff]
    %v214 = vld [vmem:[#allocation5 + $0x368] sm:$0xff]
    %v215 = vld [vmem:[#allocation5 + $0x370] sm:$0xff]
    %v216 = vld [vmem:[#allocation5 + $0x378] sm:$0xff]
    %v217 = vld [vmem:[#allocation5 + $0x380] sm:$0xff]
    %v218 = vld [vmem:[#allocation5 + $0x388] sm:$0xff]
    %v219 = vld [vmem:[#allocation5 + $0x390] sm:$0xff]
    %v220 = vld [vmem:[#allocation5 + $0x398] sm:$0xff]
    %v221 = vld [vmem:[#allocation5 + $0x3a0] sm:$0xff]
    %v222 = vld [vmem:[#allocation5 + $0x3a8] sm:$0xff]
    %v223 = vld [vmem:[#allocation5 + $0x3b0] sm:$0xff]
    %v224 = vld [vmem:[#allocation5 + $0x3b8] sm:$0xff]
    %v225 = vld [vmem:[#allocation5 + $0x3c0] sm:$0xff]
    %v226 = vld [vmem:[#allocation5 + $0x3c8] sm:$0xff]
    %v227 = vld [vmem:[#allocation5 + $0x3d0] sm:$0xff]
    %v228 = vld [vmem:[#allocation5 + $0x3d8] sm:$0xff]
    %v229 = vld [vmem:[#allocation5 + $0x3e0] sm:$0xff]
    %v230 = vld [vmem:[#allocation5 + $0x3e8] sm:$0xff]
    %v231 = vld [vmem:[#allocation5 + $0x3f0] sm:$0xff]
    %v232 = vld [vmem:[#allocation5 + $0x3f8] sm:$0xff]
    %v233 = vld [vmem:[#allocation5 + $0x400] sm:$0xff]
    %v234 = vld [vmem:[#allocation5 + $0x408] sm:$0xff]
    %v235 = vld [vmem:[#allocation5 + $0x410] sm:$0xff]
    %v236 = vld [vmem:[#allocation5 + $0x418] sm:$0xff]
    %v237 = vld [vmem:[#allocation5 + $0x420] sm:$0xff]
    %v238 = vld [vmem:[#allocation5 + $0x428] sm:$0xff]
    %v239 = vld [vmem:[#allocation5 + $0x430] sm:$0xff]
    %v240 = vld [vmem:[#allocation5 + $0x438] sm:$0xff]
    %v241 = vld [vmem:[#allocation5 + $0x440] sm:$0xff]
    %v242 = vld [vmem:[#allocation5 + $0x448] sm:$0xff]
    %v243 = vld [vmem:[#allocation5 + $0x450] sm:$0xff]
    %v244 = vld [vmem:[#allocation5 + $0x458] sm:$0xff]
    %v245 = vld [vmem:[#allocation5 + $0x460] sm:$0xff]
    %v246 = vld [vmem:[#allocation5 + $0x468] sm:$0xff]
    %v247 = vld [vmem:[#allocation5 + $0x470] sm:$0xff]
    %v248 = vld [vmem:[#allocation5 + $0x478] sm:$0xff]
    %v249 = vld [vmem:[#allocation5 + $0x480] sm:$0xff]
    %v250 = vld [vmem:[#allocation5 + $0x488] sm:$0xff]
    %v251 = vld [vmem:[#allocation5 + $0x490] sm:$0xff]
    %v252 = vld [vmem:[#allocation5 + $0x498] sm:$0xff]
    %v253 = vld [vmem:[#allocation5 + $0x4a0] sm:$0xff]
    %v254 = vld [vmem:[#allocation5 + $0x4a8] sm:$0xff]
    %v255 = vld [vmem:[#allocation5 + $0x4b0] sm:$0xff]
    %v256 = vld [vmem:[#allocation5 + $0x4b8] sm:$0xff]
    %v257 = vld [vmem:[#allocation5 + $0x4c0] sm:$0xff]
    %v258 = vld [vmem:[#allocation5 + $0x4c8] sm:$0xff]
    %v259 = vld [vmem:[#allocation5 + $0x4d0] sm:$0xff]
    %v260 = vld [vmem:[#allocation5 + $0x4d8] sm:$0xff]
    %v261 = vld [vmem:[#allocation5 + $0x4e0] sm:$0xff]
    %v262 = vld [vmem:[#allocation5 + $0x4e8] sm:$0xff]
    %v263 = vld [vmem:[#allocation5 + $0x4f0] sm:$0xff]
    %v264 = vld [vmem:[#allocation5 + $0x4f8] sm:$0xff]
    %v265 = vld [vmem:[#allocation5 + $0x500] sm:$0xff]
    %v266 = vld [vmem:[#allocation5 + $0x508] sm:$0xff]
    %v267 = vld [vmem:[#allocation5 + $0x510] sm:$0xff]
    %v268 = vld [vmem:[#allocation5 + $0x518] sm:$0xff]
    %v269 = vld [vmem:[#allocation5 + $0x520] sm:$0xff]
    %v270 = vld [vmem:[#allocation5 + $0x528] sm:$0xff]
    %v271 = vld [vmem:[#allocation5 + $0x530] sm:$0xff]
    %v272 = vld [vmem:[#allocation5 + $0x538] sm:$0xff]
    %v273 = vld [vmem:[#allocation5 + $0x540] sm:$0xff]
    %v274 = vld [vmem:[#allocation5 + $0x548] sm:$0xff]
    %v275 = vld [vmem:[#allocation5 + $0x550] sm:$0xff]
    %v276 = vld [vmem:[#allocation5 + $0x558] sm:$0xff]
    %v277 = vld [vmem:[#allocation5 + $0x560] sm:$0xff]
    %v278 = vld [vmem:[#allocation5 + $0x568] sm:$0xff]
    %v279 = vld [vmem:[#allocation5 + $0x570] sm:$0xff]
    %v280 = vld [vmem:[#allocation5 + $0x578] sm:$0xff]
    %v281 = vld [vmem:[#allocation5 + $0x580] sm:$0xff]
    %v282 = vld [vmem:[#allocation5 + $0x588] sm:$0xff]
    %v283 = vld [vmem:[#allocation5 + $0x590] sm:$0xff]
    %v284 = vld [vmem:[#allocation5 + $0x598] sm:$0xff]
    %v285 = vld [vmem:[#allocation5 + $0x5a0] sm:$0xff]
    %v286 = vld [vmem:[#allocation5 + $0x5a8] sm:$0xff]
    %v287 = vld [vmem:[#allocation5 + $0x5b0] sm:$0xff]
    %v288 = vld [vmem:[#allocation5 + $0x5b8] sm:$0xff]
    %v289 = vld [vmem:[#allocation5 + $0x5c0] sm:$0xff]
    %v290 = vld [vmem:[#allocation5 + $0x5c8] sm:$0xff]
    %v291 = vld [vmem:[#allocation5 + $0x5d0] sm:$0xff]
    %v292 = vld [vmem:[#allocation5 + $0x5d8] sm:$0xff]
    %v293 = vld [vmem:[#allocation5 + $0x5e0] sm:$0xff]
    %v294 = vld [vmem:[#allocation5 + $0x5e8] sm:$0xff]
    %v295 = vld [vmem:[#allocation5 + $0x5f0] sm:$0xff]
    %v296 = vld [vmem:[#allocation5 + $0x5f8] sm:$0xff]
    %v297 = vld [vmem:[#allocation5 + $0x600] sm:$0xff]
    %v298 = vld [vmem:[#allocation5 + $0x608] sm:$0xff]
    %v299 = vld [vmem:[#allocation5 + $0x610] sm:$0xff]
    %v300 = vld [vmem:[#allocation5 + $0x618] sm:$0xff]
    %v301 = vld [vmem:[#allocation5 + $0x620] sm:$0xff]
    %v302 = vld [vmem:[#allocation5 + $0x628] sm:$0xff]
    %v303 = vld [vmem:[#allocation5 + $0x630] sm:$0xff]
    %v304 = vld [vmem:[#allocation5 + $0x638] sm:$0xff]
    %v305 = vld [vmem:[#allocation5 + $0x640] sm:$0xff]
    %v306 = vld [vmem:[#allocation5 + $0x648] sm:$0xff]
    %v307 = vld [vmem:[#allocation5 + $0x650] sm:$0xff]
    %v308 = vld [vmem:[#allocation5 + $0x658] sm:$0xff]
    %v309 = vld [vmem:[#allocation5 + $0x660] sm:$0xff]
    %v310 = vld [vmem:[#allocation5 + $0x668] sm:$0xff]
    %v311 = vld [vmem:[#allocation5 + $0x670] sm:$0xff]
    %v312 = vld [vmem:[#allocation5 + $0x678] sm:$0xff]
    %v313 = vld [vmem:[#allocation5 + $0x680] sm:$0xff]
    %v314 = vld [vmem:[#allocation5 + $0x688] sm:$0xff]
    %v315 = vld [vmem:[#allocation5 + $0x690] sm:$0xff]
    %v316 = vld [vmem:[#allocation5 + $0x698] sm:$0xff]
    %v317 = vld [vmem:[#allocation5 + $0x6a0] sm:$0xff]
    %v318 = vld [vmem:[#allocation5 + $0x6a8] sm:$0xff]
    %v319 = vld [vmem:[#allocation5 + $0x6b0] sm:$0xff]
    %v320 = vld [vmem:[#allocation5 + $0x6b8] sm:$0xff]
    %v321 = vld [vmem:[#allocation5 + $0x6c0] sm:$0xff]
    %v322 = vld [vmem:[#allocation5 + $0x6c8] sm:$0xff]
    %v323 = vld [vmem:[#allocation5 + $0x6d0] sm:$0xff]
    %v324 = vld [vmem:[#allocation5 + $0x6d8] sm:$0xff]
    %v325 = vld [vmem:[#allocation5 + $0x6e0] sm:$0xff]
    %v326 = vld [vmem:[#allocation5 + $0x6e8] sm:$0xff]
    %v327 = vld [vmem:[#allocation5 + $0x6f0] sm:$0xff]
    %v328 = vld [vmem:[#allocation5 + $0x6f8] sm:$0xff]
    %v329 = vld [vmem:[#allocation5 + $0x700] sm:$0xff]
    %v330 = vld [vmem:[#allocation5 + $0x708] sm:$0xff]
    %v331 = vld [vmem:[#allocation5 + $0x710] sm:$0xff]
    %v332 = vld [vmem:[#allocation5 + $0x718] sm:$0xff]
    %v333 = vld [vmem:[#allocation5 + $0x720] sm:$0xff]
    %v334 = vld [vmem:[#allocation5 + $0x728] sm:$0xff]
    %v335 = vld [vmem:[#allocation5 + $0x730] sm:$0xff]
    %v336 = vld [vmem:[#allocation5 + $0x738] sm:$0xff]
    %v337 = vld [vmem:[#allocation5 + $0x740] sm:$0xff]
    %v338 = vld [vmem:[#allocation5 + $0x748] sm:$0xff]
    %v339 = vld [vmem:[#allocation5 + $0x750] sm:$0xff]
    %v340 = vld [vmem:[#allocation5 + $0x758] sm:$0xff]
    %v341 = vld [vmem:[#allocation5 + $0x760] sm:$0xff]
    %v342 = vld [vmem:[#allocation5 + $0x768] sm:$0xff]
    %v343 = vld [vmem:[#allocation5 + $0x770] sm:$0xff]
    %v344 = vld [vmem:[#allocation5 + $0x778] sm:$0xff]
    %v345 = vld [vmem:[#allocation5 + $0x780] sm:$0xff]
    %v346 = vld [vmem:[#allocation5 + $0x788] sm:$0xff]
    %v347 = vld [vmem:[#allocation5 + $0x790] sm:$0xff]
    %v348 = vld [vmem:[#allocation5 + $0x798] sm:$0xff]
    %v349 = vld [vmem:[#allocation5 + $0x7a0] sm:$0xff]
    %v350 = vld [vmem:[#allocation5 + $0x7a8] sm:$0xff]
    %v351 = vld [vmem:[#allocation5 + $0x7b0] sm:$0xff]
    %v352 = vld [vmem:[#allocation5 + $0x7b8] sm:$0xff]
    %v353 = vld [vmem:[#allocation5 + $0x7c0] sm:$0xff]
    %v354 = vld [vmem:[#allocation5 + $0x7c8] sm:$0xff]
    %v355 = vld [vmem:[#allocation5 + $0x7d0] sm:$0xff]
    %v356 = vld [vmem:[#allocation5 + $0x7d8] sm:$0xff]
    %v357 = vld [vmem:[#allocation5 + $0x7e0] sm:$0xff]
    %v358 = vld [vmem:[#allocation5 + $0x7e8] sm:$0xff]
    %v359 = vld [vmem:[#allocation5 + $0x7f0] sm:$0xff]
    %v360 = vld [vmem:[#allocation5 + $0x7f8] sm:$0xff]
    %v361 = vld [vmem:[#allocation5 + $0x800] sm:$0xff]
    %v362 = vld [vmem:[#allocation5 + $0x808] sm:$0xff]
    %v363 = vld [vmem:[#allocation5 + $0x810] sm:$0xff]
    %v364 = vld [vmem:[#allocation5 + $0x818] sm:$0xff]
    %v365 = vld [vmem:[#allocation5 + $0x820] sm:$0xff]
    %v366 = vld [vmem:[#allocation5 + $0x828] sm:$0xff]
    %v367 = vld [vmem:[#allocation5 + $0x830] sm:$0xff]
    %v368 = vld [vmem:[#allocation5 + $0x838] sm:$0xff]
    %v369 = vld [vmem:[#allocation5 + $0x840] sm:$0xff]
    %v370 = vld [vmem:[#allocation5 + $0x848] sm:$0xff]
    %v371 = vld [vmem:[#allocation5 + $0x850] sm:$0xff]
    %v372 = vld [vmem:[#allocation5 + $0x858] sm:$0xff]
    %v373 = vld [vmem:[#allocation5 + $0x860] sm:$0xff]
    %v374 = vld [vmem:[#allocation5 + $0x868] sm:$0xff]
    %v375 = vld [vmem:[#allocation5 + $0x870] sm:$0xff]
    %v376 = vld [vmem:[#allocation5 + $0x878] sm:$0xff]
    %v377 = vld [vmem:[#allocation5 + $0x880] sm:$0xff]
    %v378 = vld [vmem:[#allocation5 + $0x888] sm:$0xff]
    %v379 = vld [vmem:[#allocation5 + $0x890] sm:$0xff]
    %v380 = vld [vmem:[#allocation5 + $0x898] sm:$0xff]
    %v381 = vld [vmem:[#allocation5 + $0x8a0] sm:$0xff]
    %v382 = vld [vmem:[#allocation5 + $0x8a8] sm:$0xff]
    %v383 = vld [vmem:[#allocation5 + $0x8b0] sm:$0xff]
    %v384 = vld [vmem:[#allocation5 + $0x8b8] sm:$0xff]
    %v385 = vld [vmem:[#allocation5 + $0x8c0] sm:$0xff]
    %v386 = vld [vmem:[#allocation5 + $0x8c8] sm:$0xff]
    %v387 = vld [vmem:[#allocation5 + $0x8d0] sm:$0xff]
    %v388 = vld [vmem:[#allocation5 + $0x8d8] sm:$0xff]
    %v389 = vld [vmem:[#allocation5 + $0x8e0] sm:$0xff]
    %v390 = vld [vmem:[#allocation5 + $0x8e8] sm:$0xff]
    %v391 = vld [vmem:[#allocation5 + $0x8f0] sm:$0xff]
    %v392 = vld [vmem:[#allocation5 + $0x8f8] sm:$0xff]
    %v393 = vld [vmem:[#allocation7] sm:$0x1]
    %v395 = vlaneseq
    %v396 = vshrl.u32 %v395, 7
    %v397 = vsub.s32 0, %v396
    %v398 = vrot.slane %v393, %v397
    %v420 = vcombine.low %v85, %v90
    %v421 = vcombine.high %v85, %v90
    %v422 = vcombine.low %v95, %v100
    %v423 = vcombine.high %v95, %v100
    %v425 = vunpack.c.l.s4 1983009808
    %v426 = vunpack.c.0.s8 %v425
    %v427 = vlaneseq
    %v428 = vshrl.u32 %v427, 7
    %v429 = vsub.s32 %v426, %v428
    %v430 = vrot.slane %v420, %v429
    %v432 = vunpack.c.l.s4 1983009808
    %v433 = vunpack.c.0.s8 %v432
    %v434 = vlaneseq
    %v435 = vshrl.u32 %v434, 7
    %v436 = vsub.s32 %v433, %v435
    %v437 = vrot.slane %v421, %v436
    %v439 = vunpack.c.l.s4 1983009808
    %v440 = vunpack.c.0.s8 %v439
    %v441 = vlaneseq
    %v442 = vshrl.u32 %v441, 7
    %v443 = vsub.s32 %v440, %v442
    %v444 = vrot.slane %v422, %v443
    %v446 = vunpack.c.l.s4 1983009808
    %v447 = vunpack.c.0.s8 %v446
    %v448 = vlaneseq
    %v449 = vshrl.u32 %v448, 7
    %v450 = vsub.s32 %v447, %v449
    %v451 = vrot.slane %v423, %v450
    %v452 = vcombine.low %v430, %v444
    %v453 = vcombine.high %v430, %v444
    %v454 = vcombine.low %v437, %v451
    %v455 = vcombine.high %v437, %v451
    %v456 = vcombine.low %v86, %v91
    %v457 = vcombine.high %v86, %v91
    %v458 = vcombine.low %v96, %v101
    %v459 = vcombine.high %v96, %v101
    %v461 = vunpack.c.l.s4 1983009808
    %v462 = vunpack.c.0.s8 %v461
    %v463 = vlaneseq
    %v464 = vshrl.u32 %v463, 7
    %v465 = vsub.s32 %v462, %v464
    %v466 = vrot.slane %v456, %v465
    %v468 = vunpack.c.l.s4 1983009808
    %v469 = vunpack.c.0.s8 %v468
    %v470 = vlaneseq
    %v471 = vshrl.u32 %v470, 7
    %v472 = vsub.s32 %v469, %v471
    %v473 = vrot.slane %v457, %v472
    %v475 = vunpack.c.l.s4 1983009808
    %v476 = vunpack.c.0.s8 %v475
    %v477 = vlaneseq
    %v478 = vshrl.u32 %v477, 7
    %v479 = vsub.s32 %v476, %v478
    %v480 = vrot.slane %v458, %v479
    %v482 = vunpack.c.l.s4 1983009808
    %v483 = vunpack.c.0.s8 %v482
    %v484 = vlaneseq
    %v485 = vshrl.u32 %v484, 7
    %v486 = vsub.s32 %v483, %v485
    %v487 = vrot.slane %v459, %v486
    %v488 = vcombine.low %v466, %v480
    %v489 = vcombine.high %v466, %v480
    %v490 = vcombine.low %v473, %v487
    %v491 = vcombine.high %v473, %v487
    %v492 = vcombine.low %v87, %v92
    %v493 = vcombine.high %v87, %v92
    %v494 = vcombine.low %v97, %v102
    %v495 = vcombine.high %v97, %v102
    %v497 = vunpack.c.l.s4 1983009808
    %v498 = vunpack.c.0.s8 %v497
    %v499 = vlaneseq
    %v500 = vshrl.u32 %v499, 7
    %v501 = vsub.s32 %v498, %v500
    %v502 = vrot.slane %v492, %v501
    %v504 = vunpack.c.l.s4 1983009808
    %v505 = vunpack.c.0.s8 %v504
    %v506 = vlaneseq
    %v507 = vshrl.u32 %v506, 7
    %v508 = vsub.s32 %v505, %v507
    %v509 = vrot.slane %v493, %v508
    %v511 = vunpack.c.l.s4 1983009808
    %v512 = vunpack.c.0.s8 %v511
    %v513 = vlaneseq
    %v514 = vshrl.u32 %v513, 7
    %v515 = vsub.s32 %v512, %v514
    %v516 = vrot.slane %v494, %v515
    %v518 = vunpack.c.l.s4 1983009808
    %v519 = vunpack.c.0.s8 %v518
    %v520 = vlaneseq
    %v521 = vshrl.u32 %v520, 7
    %v522 = vsub.s32 %v519, %v521
    %v523 = vrot.slane %v495, %v522
    %v524 = vcombine.low %v502, %v516
    %v525 = vcombine.high %v502, %v516
    %v526 = vcombine.low %v509, %v523
    %v527 = vcombine.high %v509, %v523
    %v528 = vcombine.low %v88, %v93
    %v529 = vcombine.high %v88, %v93
    %v530 = vcombine.low %v98, %v103
    %v531 = vcombine.high %v98, %v103
    %v533 = vunpack.c.l.s4 1983009808
    %v534 = vunpack.c.0.s8 %v533
    %v535 = vlaneseq
    %v536 = vshrl.u32 %v535, 7
    %v537 = vsub.s32 %v534, %v536
    %v538 = vrot.slane %v528, %v537
    %v540 = vunpack.c.l.s4 1983009808
    %v541 = vunpack.c.0.s8 %v540
    %v542 = vlaneseq
    %v543 = vshrl.u32 %v542, 7
    %v544 = vsub.s32 %v541, %v543
    %v545 = vrot.slane %v529, %v544
    %v547 = vunpack.c.l.s4 1983009808
    %v548 = vunpack.c.0.s8 %v547
    %v549 = vlaneseq
    %v550 = vshrl.u32 %v549, 7
    %v551 = vsub.s32 %v548, %v550
    %v552 = vrot.slane %v530, %v551
    %v554 = vunpack.c.l.s4 1983009808
    %v555 = vunpack.c.0.s8 %v554
    %v556 = vlaneseq
    %v557 = vshrl.u32 %v556, 7
    %v558 = vsub.s32 %v555, %v557
    %v559 = vrot.slane %v531, %v558
    %v560 = vcombine.low %v538, %v552
    %v561 = vcombine.high %v538, %v552
    %v562 = vcombine.low %v545, %v559
    %v563 = vcombine.high %v545, %v559
    %v564 = vcombine.low %v89, %v94
    %v565 = vcombine.low %v99, %v104
    %v567 = vunpack.c.l.s4 1983009808
    %v568 = vunpack.c.0.s8 %v567
    %v569 = vlaneseq
    %v570 = vshrl.u32 %v569, 7
    %v571 = vsub.s32 %v568, %v570
    %v572 = vrot.slane %v564, %v571
    %v574 = vunpack.c.l.s4 1983009808
    %v575 = vunpack.c.0.s8 %v574
    %v576 = vlaneseq
    %v577 = vshrl.u32 %v576, 7
    %v578 = vsub.s32 %v575, %v577
    %v579 = vrot.slane %v565, %v578
    %v580 = vcombine.low %v572, %v579
    %v581 = vcombine.high %v572, %v579
    %600 = vmatprep.subr.mxu0 0.0
    %601 = vmatpush1.msra.mxu0 %v120
    %602 = vmatprep.subr.mxu0 0.0
    %603 = vmatpush1.msra.mxu0 %v119
    %604 = vmatprep.subr.mxu0 0.0
    %605 = vmatpush1.msra.mxu0 %v118
    %606 = vmatprep.subr.mxu0 0.0
    %607 = vmatpush1.msra.mxu0 %v117
    %608 = vmatprep.subr.mxu0 0.0
    %609 = vmatpush1.msra.mxu0 %v116
    %610 = vmatprep.subr.mxu0 0.0
    %611 = vmatpush1.msra.mxu0 %v115
    %612 = vmatprep.subr.mxu0 0.0
    %613 = vmatpush1.msra.mxu0 %v114
    %614 = vmatprep.subr.mxu0 0.0
    %615 = vmatpush1.msra.mxu0 %v113
    %616 = vmatprep.subr.mxu0 0.0
    %617 = vmatpush1.msra.mxu0 %v112
    %618 = vmatprep.subr.mxu0 0.0
    %619 = vmatpush1.msra.mxu0 %v111
    %620 = vmatprep.subr.mxu0 0.0
    %621 = vmatpush1.msra.mxu0 %v110
    %622 = vmatprep.subr.mxu0 0.0
    %623 = vmatpush1.msra.mxu0 %v109
    %624 = vmatprep.subr.mxu0 0.0
    %625 = vmatpush1.msra.mxu0 %v108
    %626 = vmatprep.subr.mxu0 0.0
    %627 = vmatpush1.msra.mxu0 %v107
    %628 = vmatprep.subr.mxu0 0.0
    %629 = vmatpush1.msra.mxu0 %v106
    %630 = vmatprep.subr.mxu0 0.0
    %631 = vmatpush1.msra.mxu0 %v105
    %632 = vmatprep.subr.mxu0 0.0
    %633 = vmatpush2.msra.mxu0 %v136
    %634 = vmatprep.subr.mxu0 0.0
    %635 = vmatpush2.msra.mxu0 %v135
    %636 = vmatprep.subr.mxu0 0.0
    %637 = vmatpush2.msra.mxu0 %v134
    %638 = vmatprep.subr.mxu0 0.0
    %639 = vmatpush2.msra.mxu0 %v133
    %640 = vmatprep.subr.mxu0 0.0
    %641 = vmatpush2.msra.mxu0 %v132
    %642 = vmatprep.subr.mxu0 0.0
    %643 = vmatpush2.msra.mxu0 %v131
    %644 = vmatprep.subr.mxu0 0.0
    %645 = vmatpush2.msra.mxu0 %v130
    %646 = vmatprep.subr.mxu0 0.0
    %647 = vmatpush2.msra.mxu0 %v129
    %648 = vmatprep.subr.mxu0 0.0
    %649 = vmatpush2.msra.mxu0 %v128
    %650 = vmatprep.subr.mxu0 0.0
    %651 = vmatpush2.msra.mxu0 %v127
    %652 = vmatprep.subr.mxu0 0.0
    %653 = vmatpush2.msra.mxu0 %v126
    %654 = vmatprep.subr.mxu0 0.0
    %655 = vmatpush2.msra.mxu0 %v125
    %656 = vmatprep.subr.mxu0 0.0
    %657 = vmatpush2.msra.mxu0 %v124
    %658 = vmatprep.subr.mxu0 0.0
    %659 = vmatpush2.msra.mxu0 %v123
    %660 = vmatprep.subr.mxu0 0.0
    %661 = vmatpush2.msra.mxu0 %v122
    %662 = vmatprep.subr.mxu0 0.0
    %663 = vmatpush2.msra.mxu0 %v121
    %664 = vmatprep.mubr.f32.mxu0 %v453
    %665 = vmatmul.mubr.f32.gmra.mxu0 %v452
    %v666 = vpop.f32.mrf.mxu0
    %v667 = vadd.f32 %v398, %v666
    %v668 = vpop.f32.mrf.mxu0
    %669 = vdwg.mxu0
    %670 = vmatprep.subr.mxu0 0.0
    %671 = vmatpush1.msra.mxu0 %v152
    %672 = vmatprep.subr.mxu0 0.0
    %673 = vmatpush1.msra.mxu0 %v151
    %674 = vmatprep.subr.mxu0 0.0
    %675 = vmatpush1.msra.mxu0 %v150
    %676 = vmatprep.subr.mxu0 0.0
    %677 = vmatpush1.msra.mxu0 %v149
    %678 = vmatprep.subr.mxu0 0.0
    %679 = vmatpush1.msra.mxu0 %v148
    %680 = vmatprep.subr.mxu0 0.0
    %681 = vmatpush1.msra.mxu0 %v147
    %682 = vmatprep.subr.mxu0 0.0
    %683 = vmatpush1.msra.mxu0 %v146
    %684 = vmatprep.subr.mxu0 0.0
    %685 = vmatpush1.msra.mxu0 %v145
    %686 = vmatprep.subr.mxu0 0.0
    %687 = vmatpush1.msra.mxu0 %v144
    %688 = vmatprep.subr.mxu0 0.0
    %689 = vmatpush1.msra.mxu0 %v143
    %690 = vmatprep.subr.mxu0 0.0
    %691 = vmatpush1.msra.mxu0 %v142
    %692 = vmatprep.subr.mxu0 0.0
    %693 = vmatpush1.msra.mxu0 %v141
    %694 = vmatprep.subr.mxu0 0.0
    %695 = vmatpush1.msra.mxu0 %v140
    %696 = vmatprep.subr.mxu0 0.0
    %697 = vmatpush1.msra.mxu0 %v139
    %698 = vmatprep.subr.mxu0 0.0
    %699 = vmatpush1.msra.mxu0 %v138
    %700 = vmatprep.subr.mxu0 0.0
    %701 = vmatpush1.msra.mxu0 %v137
    %702 = vmatprep.subr.mxu0 0.0
    %703 = vmatpush2.msra.mxu0 %v168
    %704 = vmatprep.subr.mxu0 0.0
    %705 = vmatpush2.msra.mxu0 %v167
    %706 = vmatprep.subr.mxu0 0.0
    %707 = vmatpush2.msra.mxu0 %v166
    %708 = vmatprep.subr.mxu0 0.0
    %709 = vmatpush2.msra.mxu0 %v165
    %710 = vmatprep.subr.mxu0 0.0
    %711 = vmatpush2.msra.mxu0 %v164
    %712 = vmatprep.subr.mxu0 0.0
    %713 = vmatpush2.msra.mxu0 %v163
    %714 = vmatprep.subr.mxu0 0.0
    %715 = vmatpush2.msra.mxu0 %v162
    %716 = vmatprep.subr.mxu0 0.0
    %717 = vmatpush2.msra.mxu0 %v161
    %718 = vmatprep.subr.mxu0 0.0
    %719 = vmatpush2.msra.mxu0 %v160
    %720 = vmatprep.subr.mxu0 0.0
    %721 = vmatpush2.msra.mxu0 %v159
    %722 = vmatprep.subr.mxu0 0.0
    %723 = vmatpush2.msra.mxu0 %v158
    %724 = vmatprep.subr.mxu0 0.0
    %725 = vmatpush2.msra.mxu0 %v157
    %726 = vmatprep.subr.mxu0 0.0
    %727 = vmatpush2.msra.mxu0 %v156
    %728 = vmatprep.subr.mxu0 0.0
    %729 = vmatpush2.msra.mxu0 %v155
    %730 = vmatprep.subr.mxu0 0.0
    %731 = vmatpush2.msra.mxu0 %v154
    %732 = vmatprep.subr.mxu0 0.0
    %733 = vmatpush2.msra.mxu0 %v153
    %734 = vmatprep.mubr.f32.mxu0 %v455
    %735 = vmatmul.mubr.f32.gmra.mxu0 %v454
    %v736 = vpop.f32.mrf.mxu0
    %v737 = vadd.f32 %v667, %v736
    %v738 = vpop.f32.mrf.mxu0
    %739 = vdwg.mxu0
    %740 = vmatprep.subr.mxu0 0.0
    %741 = vmatpush1.msra.mxu0 %v184
    %742 = vmatprep.subr.mxu0 0.0
    %743 = vmatpush1.msra.mxu0 %v183
    %744 = vmatprep.subr.mxu0 0.0
    %745 = vmatpush1.msra.mxu0 %v182
    %746 = vmatprep.subr.mxu0 0.0
    %747 = vmatpush1.msra.mxu0 %v181
    %748 = vmatprep.subr.mxu0 0.0
    %749 = vmatpush1.msra.mxu0 %v180
    %750 = vmatprep.subr.mxu0 0.0
    %751 = vmatpush1.msra.mxu0 %v179
    %752 = vmatprep.subr.mxu0 0.0
    %753 = vmatpush1.msra.mxu0 %v178
    %754 = vmatprep.subr.mxu0 0.0
    %755 = vmatpush1.msra.mxu0 %v177
    %756 = vmatprep.subr.mxu0 0.0
    %757 = vmatpush1.msra.mxu0 %v176
    %758 = vmatprep.subr.mxu0 0.0
    %759 = vmatpush1.msra.mxu0 %v175
    %760 = vmatprep.subr.mxu0 0.0
    %761 = vmatpush1.msra.mxu0 %v174
    %762 = vmatprep.subr.mxu0 0.0
    %763 = vmatpush1.msra.mxu0 %v173
    %764 = vmatprep.subr.mxu0 0.0
    %765 = vmatpush1.msra.mxu0 %v172
    %766 = vmatprep.subr.mxu0 0.0
    %767 = vmatpush1.msra.mxu0 %v171
    %768 = vmatprep.subr.mxu0 0.0
    %769 = vmatpush1.msra.mxu0 %v170
    %770 = vmatprep.subr.mxu0 0.0
    %771 = vmatpush1.msra.mxu0 %v169
    %772 = vmatprep.subr.mxu0 0.0
    %773 = vmatpush2.msra.mxu0 %v200
    %774 = vmatprep.subr.mxu0 0.0
    %775 = vmatpush2.msra.mxu0 %v199
    %776 = vmatprep.subr.mxu0 0.0
    %777 = vmatpush2.msra.mxu0 %v198
    %778 = vmatprep.subr.mxu0 0.0
    %779 = vmatpush2.msra.mxu0 %v197
    %780 = vmatprep.subr.mxu0 0.0
    %781 = vmatpush2.msra.mxu0 %v196
    %782 = vmatprep.subr.mxu0 0.0
    %783 = vmatpush2.msra.mxu0 %v195
    %784 = vmatprep.subr.mxu0 0.0
    %785 = vmatpush2.msra.mxu0 %v194
    %786 = vmatprep.subr.mxu0 0.0
    %787 = vmatpush2.msra.mxu0 %v193
    %788 = vmatprep.subr.mxu0 0.0
    %789 = vmatpush2.msra.mxu0 %v192
    %790 = vmatprep.subr.mxu0 0.0
    %791 = vmatpush2.msra.mxu0 %v191
    %792 = vmatprep.subr.mxu0 0.0
    %793 = vmatpush2.msra.mxu0 %v190
    %794 = vmatprep.subr.mxu0 0.0
    %795 = vmatpush2.msra.mxu0 %v189
    %796 = vmatprep.subr.mxu0 0.0
    %797 = vmatpush2.msra.mxu0 %v188
    %798 = vmatprep.subr.mxu0 0.0
    %799 = vmatpush2.msra.mxu0 %v187
    %800 = vmatprep.subr.mxu0 0.0
    %801 = vmatpush2.msra.mxu0 %v186
    %802 = vmatprep.subr.mxu0 0.0
    %803 = vmatpush2.msra.mxu0 %v185
    %804 = vmatprep.mubr.f32.mxu0 %v489
    %805 = vmatmul.mubr.f32.gmra.mxu0 %v488
    %v806 = vpop.f32.mrf.mxu0
    %v807 = vadd.f32 %v737, %v806
    %v808 = vpop.f32.mrf.mxu0
    %809 = vdwg.mxu0
    %810 = vmatprep.subr.mxu0 0.0
    %811 = vmatpush1.msra.mxu0 %v216
    %812 = vmatprep.subr.mxu0 0.0
    %813 = vmatpush1.msra.mxu0 %v215
    %814 = vmatprep.subr.mxu0 0.0
    %815 = vmatpush1.msra.mxu0 %v214
    %816 = vmatprep.subr.mxu0 0.0
    %817 = vmatpush1.msra.mxu0 %v213
    %818 = vmatprep.subr.mxu0 0.0
    %819 = vmatpush1.msra.mxu0 %v212
    %820 = vmatprep.subr.mxu0 0.0
    %821 = vmatpush1.msra.mxu0 %v211
    %822 = vmatprep.subr.mxu0 0.0
    %823 = vmatpush1.msra.mxu0 %v210
    %824 = vmatprep.subr.mxu0 0.0
    %825 = vmatpush1.msra.mxu0 %v209
    %826 = vmatprep.subr.mxu0 0.0
    %827 = vmatpush1.msra.mxu0 %v208
    %828 = vmatprep.subr.mxu0 0.0
    %829 = vmatpush1.msra.mxu0 %v207
    %830 = vmatprep.subr.mxu0 0.0
    %831 = vmatpush1.msra.mxu0 %v206
    %832 = vmatprep.subr.mxu0 0.0
    %833 = vmatpush1.msra.mxu0 %v205
    %834 = vmatprep.subr.mxu0 0.0
    %835 = vmatpush1.msra.mxu0 %v204
    %836 = vmatprep.subr.mxu0 0.0
    %837 = vmatpush1.msra.mxu0 %v203
    %838 = vmatprep.subr.mxu0 0.0
    %839 = vmatpush1.msra.mxu0 %v202
    %840 = vmatprep.subr.mxu0 0.0
    %841 = vmatpush1.msra.mxu0 %v201
    %842 = vmatprep.subr.mxu0 0.0
    %843 = vmatpush2.msra.mxu0 %v232
    %844 = vmatprep.subr.mxu0 0.0
    %845 = vmatpush2.msra.mxu0 %v231
    %846 = vmatprep.subr.mxu0 0.0
    %847 = vmatpush2.msra.mxu0 %v230
    %848 = vmatprep.subr.mxu0 0.0
    %849 = vmatpush2.msra.mxu0 %v229
    %850 = vmatprep.subr.mxu0 0.0
    %851 = vmatpush2.msra.mxu0 %v228
    %852 = vmatprep.subr.mxu0 0.0
    %853 = vmatpush2.msra.mxu0 %v227
    %854 = vmatprep.subr.mxu0 0.0
    %855 = vmatpush2.msra.mxu0 %v226
    %856 = vmatprep.subr.mxu0 0.0
    %857 = vmatpush2.msra.mxu0 %v225
    %858 = vmatprep.subr.mxu0 0.0
    %859 = vmatpush2.msra.mxu0 %v224
    %860 = vmatprep.subr.mxu0 0.0
    %861 = vmatpush2.msra.mxu0 %v223
    %862 = vmatprep.subr.mxu0 0.0
    %863 = vmatpush2.msra.mxu0 %v222
    %864 = vmatprep.subr.mxu0 0.0
    %865 = vmatpush2.msra.mxu0 %v221
    %866 = vmatprep.subr.mxu0 0.0
    %867 = vmatpush2.msra.mxu0 %v220
    %868 = vmatprep.subr.mxu0 0.0
    %869 = vmatpush2.msra.mxu0 %v219
    %870 = vmatprep.subr.mxu0 0.0
    %871 = vmatpush2.msra.mxu0 %v218
    %872 = vmatprep.subr.mxu0 0.0
    %873 = vmatpush2.msra.mxu0 %v217
    %874 = vmatprep.mubr.f32.mxu0 %v491
    %875 = vmatmul.mubr.f32.gmra.mxu0 %v490
    %v876 = vpop.f32.mrf.mxu0
    %v877 = vadd.f32 %v807, %v876
    %v878 = vpop.f32.mrf.mxu0
    %879 = vdwg.mxu0
    %880 = vmatprep.subr.mxu0 0.0
    %881 = vmatpush1.msra.mxu0 %v248
    %882 = vmatprep.subr.mxu0 0.0
    %883 = vmatpush1.msra.mxu0 %v247
    %884 = vmatprep.subr.mxu0 0.0
    %885 = vmatpush1.msra.mxu0 %v246
    %886 = vmatprep.subr.mxu0 0.0
    %887 = vmatpush1.msra.mxu0 %v245
    %888 = vmatprep.subr.mxu0 0.0
    %889 = vmatpush1.msra.mxu0 %v244
    %890 = vmatprep.subr.mxu0 0.0
    %891 = vmatpush1.msra.mxu0 %v243
    %892 = vmatprep.subr.mxu0 0.0
    %893 = vmatpush1.msra.mxu0 %v242
    %894 = vmatprep.subr.mxu0 0.0
    %895 = vmatpush1.msra.mxu0 %v241
    %896 = vmatprep.subr.mxu0 0.0
    %897 = vmatpush1.msra.mxu0 %v240
    %898 = vmatprep.subr.mxu0 0.0
    %899 = vmatpush1.msra.mxu0 %v239
    %900 = vmatprep.subr.mxu0 0.0
    %901 = vmatpush1.msra.mxu0 %v238
    %902 = vmatprep.subr.mxu0 0.0
    %903 = vmatpush1.msra.mxu0 %v237
    %904 = vmatprep.subr.mxu0 0.0
    %905 = vmatpush1.msra.mxu0 %v236
    %906 = vmatprep.subr.mxu0 0.0
    %907 = vmatpush1.msra.mxu0 %v235
    %908 = vmatprep.subr.mxu0 0.0
    %909 = vmatpush1.msra.mxu0 %v234
    %910 = vmatprep.subr.mxu0 0.0
    %911 = vmatpush1.msra.mxu0 %v233
    %912 = vmatprep.subr.mxu0 0.0
    %913 = vmatpush2.msra.mxu0 %v264
    %914 = vmatprep.subr.mxu0 0.0
    %915 = vmatpush2.msra.mxu0 %v263
    %916 = vmatprep.subr.mxu0 0.0
    %917 = vmatpush2.msra.mxu0 %v262
    %918 = vmatprep.subr.mxu0 0.0
    %919 = vmatpush2.msra.mxu0 %v261
    %920 = vmatprep.subr.mxu0 0.0
    %921 = vmatpush2.msra.mxu0 %v260
    %922 = vmatprep.subr.mxu0 0.0
    %923 = vmatpush2.msra.mxu0 %v259
    %924 = vmatprep.subr.mxu0 0.0
    %925 = vmatpush2.msra.mxu0 %v258
    %926 = vmatprep.subr.mxu0 0.0
    %927 = vmatpush2.msra.mxu0 %v257
    %928 = vmatprep.subr.mxu0 0.0
    %929 = vmatpush2.msra.mxu0 %v256
    %930 = vmatprep.subr.mxu0 0.0
    %931 = vmatpush2.msra.mxu0 %v255
    %932 = vmatprep.subr.mxu0 0.0
    %933 = vmatpush2.msra.mxu0 %v254
    %934 = vmatprep.subr.mxu0 0.0
    %935 = vmatpush2.msra.mxu0 %v253
    %936 = vmatprep.subr.mxu0 0.0
    %937 = vmatpush2.msra.mxu0 %v252
    %938 = vmatprep.subr.mxu0 0.0
    %939 = vmatpush2.msra.mxu0 %v251
    %940 = vmatprep.subr.mxu0 0.0
    %941 = vmatpush2.msra.mxu0 %v250
    %942 = vmatprep.subr.mxu0 0.0
    %943 = vmatpush2.msra.mxu0 %v249
    %944 = vmatprep.mubr.f32.mxu0 %v525
    %945 = vmatmul.mubr.f32.gmra.mxu0 %v524
    %v946 = vpop.f32.mrf.mxu0
    %v947 = vadd.f32 %v877, %v946
    %v948 = vpop.f32.mrf.mxu0
    %949 = vdwg.mxu0
    %950 = vmatprep.subr.mxu0 0.0
    %951 = vmatpush1.msra.mxu0 %v280
    %952 = vmatprep.subr.mxu0 0.0
    %953 = vmatpush1.msra.mxu0 %v279
    %954 = vmatprep.subr.mxu0 0.0
    %955 = vmatpush1.msra.mxu0 %v278
    %956 = vmatprep.subr.mxu0 0.0
    %957 = vmatpush1.msra.mxu0 %v277
    %958 = vmatprep.subr.mxu0 0.0
    %959 = vmatpush1.msra.mxu0 %v276
    %960 = vmatprep.subr.mxu0 0.0
    %961 = vmatpush1.msra.mxu0 %v275
    %962 = vmatprep.subr.mxu0 0.0
    %963 = vmatpush1.msra.mxu0 %v274
    %964 = vmatprep.subr.mxu0 0.0
    %965 = vmatpush1.msra.mxu0 %v273
    %966 = vmatprep.subr.mxu0 0.0
    %967 = vmatpush1.msra.mxu0 %v272
    %968 = vmatprep.subr.mxu0 0.0
    %969 = vmatpush1.msra.mxu0 %v271
    %970 = vmatprep.subr.mxu0 0.0
    %971 = vmatpush1.msra.mxu0 %v270
    %972 = vmatprep.subr.mxu0 0.0
    %973 = vmatpush1.msra.mxu0 %v269
    %974 = vmatprep.subr.mxu0 0.0
    %975 = vmatpush1.msra.mxu0 %v268
    %976 = vmatprep.subr.mxu0 0.0
    %977 = vmatpush1.msra.mxu0 %v267
    %978 = vmatprep.subr.mxu0 0.0
    %979 = vmatpush1.msra.mxu0 %v266
    %980 = vmatprep.subr.mxu0 0.0
    %981 = vmatpush1.msra.mxu0 %v265
    %982 = vmatprep.subr.mxu0 0.0
    %983 = vmatpush2.msra.mxu0 %v296
    %984 = vmatprep.subr.mxu0 0.0
    %985 = vmatpush2.msra.mxu0 %v295
    %986 = vmatprep.subr.mxu0 0.0
    %987 = vmatpush2.msra.mxu0 %v294
    %988 = vmatprep.subr.mxu0 0.0
    %989 = vmatpush2.msra.mxu0 %v293
    %990 = vmatprep.subr.mxu0 0.0
    %991 = vmatpush2.msra.mxu0 %v292
    %992 = vmatprep.subr.mxu0 0.0
    %993 = vmatpush2.msra.mxu0 %v291
    %994 = vmatprep.subr.mxu0 0.0
    %995 = vmatpush2.msra.mxu0 %v290
    %996 = vmatprep.subr.mxu0 0.0
    %997 = vmatpush2.msra.mxu0 %v289
    %998 = vmatprep.subr.mxu0 0.0
    %999 = vmatpush2.msra.mxu0 %v288
    %1000 = vmatprep.subr.mxu0 0.0
    %1001 = vmatpush2.msra.mxu0 %v287
    %1002 = vmatprep.subr.mxu0 0.0
    %1003 = vmatpush2.msra.mxu0 %v286
    %1004 = vmatprep.subr.mxu0 0.0
    %1005 = vmatpush2.msra.mxu0 %v285
    %1006 = vmatprep.subr.mxu0 0.0
    %1007 = vmatpush2.msra.mxu0 %v284
    %1008 = vmatprep.subr.mxu0 0.0
    %1009 = vmatpush2.msra.mxu0 %v283
    %1010 = vmatprep.subr.mxu0 0.0
    %1011 = vmatpush2.msra.mxu0 %v282
    %1012 = vmatprep.subr.mxu0 0.0
    %1013 = vmatpush2.msra.mxu0 %v281
    %1014 = vmatprep.mubr.f32.mxu0 %v527
    %1015 = vmatmul.mubr.f32.gmra.mxu0 %v526
    %v1016 = vpop.f32.mrf.mxu0
    %v1017 = vadd.f32 %v947, %v1016
    %v1018 = vpop.f32.mrf.mxu0
    %1019 = vdwg.mxu0
    %1020 = vmatprep.subr.mxu0 0.0
    %1021 = vmatpush1.msra.mxu0 %v312
    %1022 = vmatprep.subr.mxu0 0.0
    %1023 = vmatpush1.msra.mxu0 %v311
    %1024 = vmatprep.subr.mxu0 0.0
    %1025 = vmatpush1.msra.mxu0 %v310
    %1026 = vmatprep.subr.mxu0 0.0
    %1027 = vmatpush1.msra.mxu0 %v309
    %1028 = vmatprep.subr.mxu0 0.0
    %1029 = vmatpush1.msra.mxu0 %v308
    %1030 = vmatprep.subr.mxu0 0.0
    %1031 = vmatpush1.msra.mxu0 %v307
    %1032 = vmatprep.subr.mxu0 0.0
    %1033 = vmatpush1.msra.mxu0 %v306
    %1034 = vmatprep.subr.mxu0 0.0
    %1035 = vmatpush1.msra.mxu0 %v305
    %1036 = vmatprep.subr.mxu0 0.0
    %1037 = vmatpush1.msra.mxu0 %v304
    %1038 = vmatprep.subr.mxu0 0.0
    %1039 = vmatpush1.msra.mxu0 %v303
    %1040 = vmatprep.subr.mxu0 0.0
    %1041 = vmatpush1.msra.mxu0 %v302
    %1042 = vmatprep.subr.mxu0 0.0
    %1043 = vmatpush1.msra.mxu0 %v301
    %1044 = vmatprep.subr.mxu0 0.0
    %1045 = vmatpush1.msra.mxu0 %v300
    %1046 = vmatprep.subr.mxu0 0.0
    %1047 = vmatpush1.msra.mxu0 %v299
    %1048 = vmatprep.subr.mxu0 0.0
    %1049 = vmatpush1.msra.mxu0 %v298
    %1050 = vmatprep.subr.mxu0 0.0
    %1051 = vmatpush1.msra.mxu0 %v297
    %1052 = vmatprep.subr.mxu0 0.0
    %1053 = vmatpush2.msra.mxu0 %v328
    %1054 = vmatprep.subr.mxu0 0.0
    %1055 = vmatpush2.msra.mxu0 %v327
    %1056 = vmatprep.subr.mxu0 0.0
    %1057 = vmatpush2.msra.mxu0 %v326
    %1058 = vmatprep.subr.mxu0 0.0
    %1059 = vmatpush2.msra.mxu0 %v325
    %1060 = vmatprep.subr.mxu0 0.0
    %1061 = vmatpush2.msra.mxu0 %v324
    %1062 = vmatprep.subr.mxu0 0.0
    %1063 = vmatpush2.msra.mxu0 %v323
    %1064 = vmatprep.subr.mxu0 0.0
    %1065 = vmatpush2.msra.mxu0 %v322
    %1066 = vmatprep.subr.mxu0 0.0
    %1067 = vmatpush2.msra.mxu0 %v321
    %1068 = vmatprep.subr.mxu0 0.0
    %1069 = vmatpush2.msra.mxu0 %v320
    %1070 = vmatprep.subr.mxu0 0.0
    %1071 = vmatpush2.msra.mxu0 %v319
    %1072 = vmatprep.subr.mxu0 0.0
    %1073 = vmatpush2.msra.mxu0 %v318
    %1074 = vmatprep.subr.mxu0 0.0
    %1075 = vmatpush2.msra.mxu0 %v317
    %1076 = vmatprep.subr.mxu0 0.0
    %1077 = vmatpush2.msra.mxu0 %v316
    %1078 = vmatprep.subr.mxu0 0.0
    %1079 = vmatpush2.msra.mxu0 %v315
    %1080 = vmatprep.subr.mxu0 0.0
    %1081 = vmatpush2.msra.mxu0 %v314
    %1082 = vmatprep.subr.mxu0 0.0
    %1083 = vmatpush2.msra.mxu0 %v313
    %1084 = vmatprep.mubr.f32.mxu0 %v561
    %1085 = vmatmul.mubr.f32.gmra.mxu0 %v560
    %v1086 = vpop.f32.mrf.mxu0
    %v1087 = vadd.f32 %v1017, %v1086
    %v1088 = vpop.f32.mrf.mxu0
    %1089 = vdwg.mxu0
    %1090 = vmatprep.subr.mxu0 0.0
    %1091 = vmatpush1.msra.mxu0 %v344
    %1092 = vmatprep.subr.mxu0 0.0
    %1093 = vmatpush1.msra.mxu0 %v343
    %1094 = vmatprep.subr.mxu0 0.0
    %1095 = vmatpush1.msra.mxu0 %v342
    %1096 = vmatprep.subr.mxu0 0.0
    %1097 = vmatpush1.msra.mxu0 %v341
    %1098 = vmatprep.subr.mxu0 0.0
    %1099 = vmatpush1.msra.mxu0 %v340
    %1100 = vmatprep.subr.mxu0 0.0
    %1101 = vmatpush1.msra.mxu0 %v339
    %1102 = vmatprep.subr.mxu0 0.0
    %1103 = vmatpush1.msra.mxu0 %v338
    %1104 = vmatprep.subr.mxu0 0.0
    %1105 = vmatpush1.msra.mxu0 %v337
    %1106 = vmatprep.subr.mxu0 0.0
    %1107 = vmatpush1.msra.mxu0 %v336
    %1108 = vmatprep.subr.mxu0 0.0
    %1109 = vmatpush1.msra.mxu0 %v335
    %1110 = vmatprep.subr.mxu0 0.0
    %1111 = vmatpush1.msra.mxu0 %v334
    %1112 = vmatprep.subr.mxu0 0.0
    %1113 = vmatpush1.msra.mxu0 %v333
    %1114 = vmatprep.subr.mxu0 0.0
    %1115 = vmatpush1.msra.mxu0 %v332
    %1116 = vmatprep.subr.mxu0 0.0
    %1117 = vmatpush1.msra.mxu0 %v331
    %1118 = vmatprep.subr.mxu0 0.0
    %1119 = vmatpush1.msra.mxu0 %v330
    %1120 = vmatprep.subr.mxu0 0.0
    %1121 = vmatpush1.msra.mxu0 %v329
    %1122 = vmatprep.subr.mxu0 0.0
    %1123 = vmatpush2.msra.mxu0 %v360
    %1124 = vmatprep.subr.mxu0 0.0
    %1125 = vmatpush2.msra.mxu0 %v359
    %1126 = vmatprep.subr.mxu0 0.0
    %1127 = vmatpush2.msra.mxu0 %v358
    %1128 = vmatprep.subr.mxu0 0.0
    %1129 = vmatpush2.msra.mxu0 %v357
    %1130 = vmatprep.subr.mxu0 0.0
    %1131 = vmatpush2.msra.mxu0 %v356
    %1132 = vmatprep.subr.mxu0 0.0
    %1133 = vmatpush2.msra.mxu0 %v355
    %1134 = vmatprep.subr.mxu0 0.0
    %1135 = vmatpush2.msra.mxu0 %v354
    %1136 = vmatprep.subr.mxu0 0.0
    %1137 = vmatpush2.msra.mxu0 %v353
    %1138 = vmatprep.subr.mxu0 0.0
    %1139 = vmatpush2.msra.mxu0 %v352
    %1140 = vmatprep.subr.mxu0 0.0
    %1141 = vmatpush2.msra.mxu0 %v351
    %1142 = vmatprep.subr.mxu0 0.0
    %1143 = vmatpush2.msra.mxu0 %v350
    %1144 = vmatprep.subr.mxu0 0.0
    %1145 = vmatpush2.msra.mxu0 %v349
    %1146 = vmatprep.subr.mxu0 0.0
    %1147 = vmatpush2.msra.mxu0 %v348
    %1148 = vmatprep.subr.mxu0 0.0
    %1149 = vmatpush2.msra.mxu0 %v347
    %1150 = vmatprep.subr.mxu0 0.0
    %1151 = vmatpush2.msra.mxu0 %v346
    %1152 = vmatprep.subr.mxu0 0.0
    %1153 = vmatpush2.msra.mxu0 %v345
    %1154 = vmatprep.mubr.f32.mxu0 %v563
    %1155 = vmatmul.mubr.f32.gmra.mxu0 %v562
    %v1156 = vpop.f32.mrf.mxu0
    %v1157 = vadd.f32 %v1087, %v1156
    %v1158 = vpop.f32.mrf.mxu0
    %1159 = vdwg.mxu0
    %1160 = vmatprep.subr.mxu0 0.0
    %1161 = vmatpush1.msra.mxu0 %v376
    %1162 = vmatprep.subr.mxu0 0.0
    %1163 = vmatpush1.msra.mxu0 %v375
    %1164 = vmatprep.subr.mxu0 0.0
    %1165 = vmatpush1.msra.mxu0 %v374
    %1166 = vmatprep.subr.mxu0 0.0
    %1167 = vmatpush1.msra.mxu0 %v373
    %1168 = vmatprep.subr.mxu0 0.0
    %1169 = vmatpush1.msra.mxu0 %v372
    %1170 = vmatprep.subr.mxu0 0.0
    %1171 = vmatpush1.msra.mxu0 %v371
    %1172 = vmatprep.subr.mxu0 0.0
    %1173 = vmatpush1.msra.mxu0 %v370
    %1174 = vmatprep.subr.mxu0 0.0
    %1175 = vmatpush1.msra.mxu0 %v369
    %1176 = vmatprep.subr.mxu0 0.0
    %1177 = vmatpush1.msra.mxu0 %v368
    %1178 = vmatprep.subr.mxu0 0.0
    %1179 = vmatpush1.msra.mxu0 %v367
    %1180 = vmatprep.subr.mxu0 0.0
    %1181 = vmatpush1.msra.mxu0 %v366
    %1182 = vmatprep.subr.mxu0 0.0
    %1183 = vmatpush1.msra.mxu0 %v365
    %1184 = vmatprep.subr.mxu0 0.0
    %1185 = vmatpush1.msra.mxu0 %v364
    %1186 = vmatprep.subr.mxu0 0.0
    %1187 = vmatpush1.msra.mxu0 %v363
    %1188 = vmatprep.subr.mxu0 0.0
    %1189 = vmatpush1.msra.mxu0 %v362
    %1190 = vmatprep.subr.mxu0 0.0
    %1191 = vmatpush1.msra.mxu0 %v361
    %1192 = vmatprep.subr.mxu0 0.0
    %1193 = vmatpush2.msra.mxu0 %v392
    %1194 = vmatprep.subr.mxu0 0.0
    %1195 = vmatpush2.msra.mxu0 %v391
    %1196 = vmatprep.subr.mxu0 0.0
    %1197 = vmatpush2.msra.mxu0 %v390
    %1198 = vmatprep.subr.mxu0 0.0
    %1199 = vmatpush2.msra.mxu0 %v389
    %1200 = vmatprep.subr.mxu0 0.0
    %1201 = vmatpush2.msra.mxu0 %v388
    %1202 = vmatprep.subr.mxu0 0.0
    %1203 = vmatpush2.msra.mxu0 %v387
    %1204 = vmatprep.subr.mxu0 0.0
    %1205 = vmatpush2.msra.mxu0 %v386
    %1206 = vmatprep.subr.mxu0 0.0
    %1207 = vmatpush2.msra.mxu0 %v385
    %1208 = vmatprep.subr.mxu0 0.0
    %1209 = vmatpush2.msra.mxu0 %v384
    %1210 = vmatprep.subr.mxu0 0.0
    %1211 = vmatpush2.msra.mxu0 %v383
    %1212 = vmatprep.subr.mxu0 0.0
    %1213 = vmatpush2.msra.mxu0 %v382
    %1214 = vmatprep.subr.mxu0 0.0
    %1215 = vmatpush2.msra.mxu0 %v381
    %1216 = vmatprep.subr.mxu0 0.0
    %1217 = vmatpush2.msra.mxu0 %v380
    %1218 = vmatprep.subr.mxu0 0.0
    %1219 = vmatpush2.msra.mxu0 %v379
    %1220 = vmatprep.subr.mxu0 0.0
    %1221 = vmatpush2.msra.mxu0 %v378
    %1222 = vmatprep.subr.mxu0 0.0
    %1223 = vmatpush2.msra.mxu0 %v377
    %1224 = vmatprep.mubr.f32.mxu0 %v581
    %1225 = vmatmul.mubr.f32.gmra.mxu0 %v580
    %v1226 = vpop.f32.mrf.mxu0
    %v1227 = vadd.f32 %v1157, %v1226
    %v1228 = vpop.f32.mrf.mxu0
    %1229 = vdwg.mxu0
    %v1230 = vmax.f32 %v1227, 0.0
    %v1231 = vld [vmem:[#allocation8] sm:$0xff]
    %v1232 = vld [vmem:[#allocation8 + $0x8] sm:$0xff]
    %v1233 = vld [vmem:[#allocation8 + $0x10] sm:$0xff]
    %v1234 = vld [vmem:[#allocation8 + $0x18] sm:$0xff]
    %v1235 = vld [vmem:[#allocation8 + $0x20] sm:$0xff]
    %v1236 = vld [vmem:[#allocation8 + $0x28] sm:$0xff]
    %v1237 = vld [vmem:[#allocation8 + $0x30] sm:$0xff]
    %v1238 = vld [vmem:[#allocation8 + $0x38] sm:$0xff]
    %v1239 = vld [vmem:[#allocation8 + $0x40] sm:$0xff]
    %v1240 = vld [vmem:[#allocation8 + $0x48] sm:$0xff]
    %v1241 = vld [vmem:[#allocation8 + $0x50] sm:$0xff]
    %v1242 = vld [vmem:[#allocation8 + $0x58] sm:$0xff]
    %v1243 = vld [vmem:[#allocation8 + $0x60] sm:$0xff]
    %v1244 = vld [vmem:[#allocation8 + $0x68] sm:$0xff]
    %v1245 = vld [vmem:[#allocation8 + $0x70] sm:$0xff]
    %v1246 = vld [vmem:[#allocation8 + $0x78] sm:$0xff]
    %v1247 = vld [vmem:[#allocation10] sm:$0x1]
    %v1249 = vlaneseq
    %v1250 = vshrl.u32 %v1249, 7
    %v1251 = vsub.s32 0, %v1250
    %v1252 = vrot.slane %v1247, %v1251
    %1254 = vmatprep.subr.mxu0 0.0
    %1255 = vmatpush1.msra.mxu0 %v1246
    %1256 = vmatprep.subr.mxu0 0.0
    %1257 = vmatpush1.msra.mxu0 %v1245
    %1258 = vmatprep.subr.mxu0 0.0
    %1259 = vmatpush1.msra.mxu0 %v1244
    %1260 = vmatprep.subr.mxu0 0.0
    %1261 = vmatpush1.msra.mxu0 %v1243
    %1262 = vmatprep.subr.mxu0 0.0
    %1263 = vmatpush1.msra.mxu0 %v1242
    %1264 = vmatprep.subr.mxu0 0.0
    %1265 = vmatpush1.msra.mxu0 %v1241
    %1266 = vmatprep.subr.mxu0 0.0
    %1267 = vmatpush1.msra.mxu0 %v1240
    %1268 = vmatprep.subr.mxu0 0.0
    %1269 = vmatpush1.msra.mxu0 %v1239
    %1270 = vmatprep.subr.mxu0 0.0
    %1271 = vmatpush1.msra.mxu0 %v1238
    %1272 = vmatprep.subr.mxu0 0.0
    %1273 = vmatpush1.msra.mxu0 %v1237
    %1274 = vmatprep.subr.mxu0 0.0
    %1275 = vmatpush1.msra.mxu0 %v1236
    %1276 = vmatprep.subr.mxu0 0.0
    %1277 = vmatpush1.msra.mxu0 %v1235
    %1278 = vmatprep.subr.mxu0 0.0
    %1279 = vmatpush1.msra.mxu0 %v1234
    %1280 = vmatprep.subr.mxu0 0.0
    %1281 = vmatpush1.msra.mxu0 %v1233
    %1282 = vmatprep.subr.mxu0 0.0
    %1283 = vmatpush1.msra.mxu0 %v1232
    %1284 = vmatprep.subr.mxu0 0.0
    %1285 = vmatpush1.msra.mxu0 %v1231
    %1286 = vmatprep.subr.mxu0 0.0
    %1287 = vmatpush2.msra.mxu0 0.0
    %1288 = vmatprep.subr.mxu0 0.0
    %1289 = vmatpush2.msra.mxu0 0.0
    %1290 = vmatprep.subr.mxu0 0.0
    %1291 = vmatpush2.msra.mxu0 0.0
    %1292 = vmatprep.subr.mxu0 0.0
    %1293 = vmatpush2.msra.mxu0 0.0
    %1294 = vmatprep.subr.mxu0 0.0
    %1295 = vmatpush2.msra.mxu0 0.0
    %1296 = vmatprep.subr.mxu0 0.0
    %1297 = vmatpush2.msra.mxu0 0.0
    %1298 = vmatprep.subr.mxu0 0.0
    %1299 = vmatpush2.msra.mxu0 0.0
    %1300 = vmatprep.subr.mxu0 0.0
    %1301 = vmatpush2.msra.mxu0 0.0
    %1302 = vmatprep.subr.mxu0 0.0
    %1303 = vmatpush2.msra.mxu0 0.0
    %1304 = vmatprep.subr.mxu0 0.0
    %1305 = vmatpush2.msra.mxu0 0.0
    %1306 = vmatprep.subr.mxu0 0.0
    %1307 = vmatpush2.msra.mxu0 0.0
    %1308 = vmatprep.subr.mxu0 0.0
    %1309 = vmatpush2.msra.mxu0 0.0
    %1310 = vmatprep.subr.mxu0 0.0
    %1311 = vmatpush2.msra.mxu0 0.0
    %1312 = vmatprep.subr.mxu0 0.0
    %1313 = vmatpush2.msra.mxu0 0.0
    %1314 = vmatprep.subr.mxu0 0.0
    %1315 = vmatpush2.msra.mxu0 0.0
    %1316 = vmatprep.subr.mxu0 0.0
    %1317 = vmatpush2.msra.mxu0 0.0
    %1318 = vmatprep.mubr.f32.mxu0 0.0
    %1319 = vmatmul.mubr.f32.gmra.mxu0 %v1230
    %v1320 = vpop.f32.mrf.mxu0
    %v1321 = vadd.f32 %v1252, %v1320
    %v1322 = vpop.f32.mrf.mxu0
    %1323 = vdwg.mxu0
    %1324 = vst [vmem:[#allocation11] sm:$0xff] %v1321
    // Predicated region
    $region42: #{_forward_impl.1} parent=1 // pred_check
      _
    $region43: #{_forward_impl.1} parent=1 // pred_check_branch
      %1326 = sbr.rel (0) target = $region45
    $region44: #{_forward_impl.1} parent=1 // pred_region
      %s1328 = ssub.s32 128, 32
      %1329 = vsyncadd [#allocation4], %s1328
      %s1330 = sshll.u32 [#allocation11], 4
      %s1331 = int_to_ptr.vmem [resolvable:$true] %s1330
      %1336 = dma.vmem_to_hbm [thread:$0]  %s1331, 32, %s5, [#allocation4], 32, 32, 2
    $region45: #{_forward_impl.1} parent=1 // pred_fallthru
      _
    // Predicated region
    $region46: #{_forward_impl.1} parent=1 // pred_check
      _
    $region47: #{_forward_impl.1} parent=1 // pred_check_branch
      %1338 = sbr.rel (0) target = $region49
    $region48: #{_forward_impl.1} parent=1 // pred_region
      %1339 = dma.done [#allocation4], 128
    $region49: #{_forward_impl.1} parent=1 // pred_fallthru
      _
    %1340 = vsyncpa [#allocation3], 1
    %1341 = vsyncpa [#allocation6], 1
    %1342 = vsyncpa [#allocation9], 1
    %1343 = vsyncpa [#allocation4], 1

</llo_original>
